<compile_context>
chip_gen: v7x
topology: tpu7x:2x2x1
jax: 0.10.0
libtpu: 0.0.40
codegen_flags: <defaults>
</compile_context>

<pallas_src>
import math
import jax
import jax.numpy as jnp
from jax.experimental import pallas as pl
from jax.experimental.pallas import tpu as pltpu


def make_self_attention_kernel(n_heads: int, head_dim: int, seq_len: int, att_dtype):
    f32 = jnp.float32

    def kernel(q_ref, k_ref, v_ref,
               wqkv_ref, bqkv_ref, wf_ref, bf_ref,
               o_ref,
               q_s, k_s, v_s, ctx_s):
        rows, H = q_ref.shape            # rows = Bt * L
        L = seq_len
        Bt = rows // L
        d = head_dim

        # ---- input projections: three fat (rows,H)@(H,H) MXU matmuls, f32 acc.
        # (A single (rows,H)@(H,3H) fusion only applies when q is k is v.)
        Q = jnp.dot(q_ref[...], wqkv_ref[0], preferred_element_type=f32) + bqkv_ref[0]
        K = jnp.dot(k_ref[...], wqkv_ref[1], preferred_element_type=f32) + bqkv_ref[1]
        V = jnp.dot(v_ref[...], wqkv_ref[2], preferred_element_type=f32) + bqkv_ref[2]

        # Park projections in VMEM scratch: per-head views become ref loads
        # (no value lane-subslices) and vreg live ranges do not span heads.
        q_s[...] = Q.reshape(Bt, L, H).astype(q_s.dtype)
        k_s[...] = K.reshape(Bt, L, H).astype(k_s.dtype)
        v_s[...] = V.reshape(Bt, L, H).astype(v_s.dtype)

        # ---- per-head attention. Each head's context lands in its lane slot of
        # ctx_s so the fc projection below is a single fat matmul. n_heads is
        # small & static; all cross-iteration dataflow is through refs.
        for h in range(n_heads):
            lo = h * d
            Qh = q_s[:, :, lo:lo + d]            # (Bt, L, d)
            Kh = k_s[:, :, lo:lo + d]
            Vh = v_s[:, :, lo:lo + d]

            # 1/sqrt(d) already folded into wq/bq host-side.
            energy = jnp.einsum("bqd,bkd->bqk", Qh, Kh,
                                preferred_element_type=f32)      # (Bt, L, L) f32
            # TODO(synk): mask path (masked_fill with -1e10) not implemented; mask=None only.
            energy = energy - jnp.max(energy, axis=-1, keepdims=True)
            p = jnp.exp(energy)
            p = p * pl.reciprocal(jnp.sum(p, axis=-1, keepdims=True), approx=True)
            # TODO(synk): dropout is identity (eval mode); no RNG applied.

            ctx = jnp.einsum("bqk,bkd->bqd", p.astype(att_dtype), Vh,
                             preferred_element_type=f32)         # (Bt, L, d) f32
            ctx_s[:, lo:lo + d] = ctx.reshape(rows, d).astype(ctx_s.dtype)

        # ---- output projection: one fat (rows,H)@(H,H) bf16 matmul + bias.
        out = jnp.dot(ctx_s[...], wf_ref[...], preferred_element_type=f32) + bf_ref[...]
        o_ref[...] = out.astype(o_ref.dtype)

    return kernel


def _vmem_capacity_bytes() -> int:
    try:
        return int(pltpu.get_tpu_info().vmem_capacity_bytes)
    except Exception:
        return 128 * 1024 * 1024   # conservative v5e/v6e default


def _pick_batch_tile(B: int, L: int, target_rows: int, cap_half: bool) -> int:
    bt = max(1, min(B, target_rows // max(1, L)))
    if cap_half and B >= 2:
        bt = min(bt, max(1, B // 2))     # >= 2 grid steps on 2-TC chips
    while bt > 1 and (B % bt != 0 or (bt * L) % 8 != 0):
        bt -= 1
    if B % bt != 0 or ((bt * L) % 8 != 0 and bt != B):
        bt = B                            # full-array block always legal
    return bt


def self_attention(query, key, value, params, n_heads: int, *, block_batch=None,
                   out_dtype=jnp.bfloat16):
    """query/key/value: [B, L, H] f32. params: weights (in,out), biases (1,H)."""
    B, L, H = query.shape
    assert H % n_heads == 0
    d = H // n_heads
    scale = math.sqrt(float(d))
    f32 = jnp.float32
    bf16 = jnp.bfloat16

    vmem_cap = _vmem_capacity_bytes()
    small_vmem = vmem_cap <= 64 * 1024 * 1024    # v7x-like: 64 MiB VMEM, 2 TCs/chip

    # ---- batch tile: ~512 rows per grid step (>= 256-wide MXU floor on v6e/v7x,
    # amortizes the ~0.35us per-step overhead); Bt must divide B.
    if block_batch is None:
        Bt = _pick_batch_tile(B, L, target_rows=512, cap_half=small_vmem)
    else:
        Bt = block_batch
        assert B % Bt == 0
    grid = (B // Bt,)
    rows = Bt * L

    # bf16 score path only when L packs bf16 sublanes cleanly.
    att_dtype = bf16 if (L % 16 == 0) else f32

    # ---- host-side parameter prep (once, outside the kernel) ----
    wqkv = jnp.stack([params["wq"] / scale, params["wk"], params["wv"]], 0).astype(bf16)
    bqkv = jnp.stack([params["bq"] / scale, params["bk"], params["bv"]], 0).astype(f32)
    wf = params["wf"].astype(bf16)
    bf_b = params["bf"].astype(f32)

    # activations: row-flattened (B*L, H) bf16 (halves input DMA bytes)
    q2 = query.reshape(B * L, H).astype(bf16)
    k2 = key.reshape(B * L, H).astype(bf16)
    v2 = value.reshape(B * L, H).astype(bf16)

    kernel = make_self_attention_kernel(n_heads, d, L, att_dtype)

    act_spec = pl.BlockSpec((rows, H), lambda i: (i, 0))
    wqkv_spec = pl.BlockSpec((3, H, H), lambda i: (0, 0, 0))   # constant -> no re-DMA
    bqkv_spec = pl.BlockSpec((3, 1, H), lambda i: (0, 0, 0))
    wf_spec = pl.BlockSpec((H, H), lambda i: (0, 0))
    bf_spec = pl.BlockSpec((1, H), lambda i: (0, 0))
    # Note: when H < 128 the (rows, H) out block lowers to masked stores; padding
    # H to 128 (or a lane-dense (Bt, L*H) slab) would avoid that, but is kept off
    # here to stay on known-good reshape paths at arbitrary shapes.

    # ---- derive the VMEM limit from the tile footprint, with margin; cap lower
    # on 64-MiB chips so XLA keeps scoped-VMEM headroom for surrounding fusions.
    att_b = jnp.dtype(att_dtype).itemsize
    out_b = jnp.dtype(out_dtype).itemsize
    io_bytes = 2 * (3 * rows * H * 2) + 2 * (rows * H * out_b)       # dbl-buffered I/O
    w_bytes = 2 * (3 * H * H * 2 + H * H * 2 + 4 * H * 4)
    scratch_bytes = 3 * rows * H * att_b + rows * H * 2
    interm_bytes = 3 * rows * H * 4 + 2 * Bt * L * L * 4 + rows * H * 4
    need = io_bytes + w_bytes + scratch_bytes + interm_bytes
    cap = (40 if small_vmem else 96) * 1024 * 1024
    vmem_limit = int(min(cap, max(16 * 1024 * 1024, 2 * need)))

    out = pl.pallas_call(
        kernel,
        out_shape=jax.ShapeDtypeStruct((B * L, H), out_dtype),
        grid_spec=pltpu.PrefetchScalarGridSpec(
            num_scalar_prefetch=0,
            grid=grid,
            in_specs=[act_spec, act_spec, act_spec,
                      wqkv_spec, bqkv_spec, wf_spec, bf_spec],
            out_specs=act_spec,
            scratch_shapes=[
                pltpu.VMEM((Bt, L, H), att_dtype),   # q_s
                pltpu.VMEM((Bt, L, H), att_dtype),   # k_s
                pltpu.VMEM((Bt, L, H), att_dtype),   # v_s
                pltpu.VMEM((rows, H), bf16),         # ctx_s (heads merged in lanes)
            ]),
        compiler_params=pltpu.CompilerParams(
            dimension_semantics=("parallel",),
            vmem_limit_bytes=vmem_limit,
        ),
    )(q2, k2, v2, wqkv, bqkv, wf, bf_b)

    return out.reshape(B, L, H)


def reference_self_attention(query, key, value, params, n_heads: int):
    """Pure-JAX f32 reference matching the PyTorch module (eval mode, mask=None)."""
    B, L, H = query.shape
    d = H // n_heads
    scale = math.sqrt(float(d))

    def proj(x, w, b):
        return x @ w + b[0]

    Q = proj(query, params["wq"], params["bq"]).reshape(B, L, n_heads, d).transpose(0, 2, 1, 3)
    K = proj(key,   params["wk"], params["bk"]).reshape(B, L, n_heads, d).transpose(0, 2, 1, 3)
    V = proj(value, params["wv"], params["bv"]).reshape(B, L, n_heads, d).transpose(0, 2, 1, 3)

    energy = jnp.einsum("bhqd,bhkd->bhqk", Q, K) / scale
    attn = jax.nn.softmax(energy, axis=-1)
    x = jnp.einsum("bhqk,bhkd->bhqd", attn, V)
    x = x.transpose(0, 2, 1, 3).reshape(B, L, H)
    return x @ params["wf"] + params["bf"][0]


def init_params(key, hid_dim):
    """Deterministic parameter init; weights stored as (in, out), biases as (1, H)."""
    ks = jax.random.split(key, 8)
    s = 1.0 / math.sqrt(hid_dim)
    p = {}
    for name, kw, kb in [("q", ks[0], ks[1]), ("k", ks[2], ks[3]),
                         ("v", ks[4], ks[5]), ("f", ks[6], ks[7])]:
        p["w" + name] = jax.random.uniform(kw, (hid_dim, hid_dim), jnp.float32, -s, s)
        p["b" + name] = jax.random.uniform(kb, (1, hid_dim), jnp.float32, -s, s)
    return p


if __name__ == "__main__":
    B, L, H, n_heads = 2, 8, 32, 4

    root = jax.random.PRNGKey(0)
    k_params, k_q, k_k, k_v = jax.random.split(root, 4)

    params = init_params(k_params, H)
    query = jax.random.normal(k_q, (B, L, H), jnp.float32)
    key_in = jax.random.normal(k_k, (B, L, H), jnp.float32)
    value = jax.random.normal(k_v, (B, L, H), jnp.float32)

    out = self_attention(query, key_in, value, params, n_heads)
    out = jax.block_until_ready(out)

    ref = reference_self_attention(query, key_in, value, params, n_heads)
    assert out.shape == (B, L, H)
    # bf16 inputs/weights/output + approx reciprocal -> looser tolerance than pure-f32.
    assert jnp.allclose(out.astype(jnp.float32), ref, atol=3e-2, rtol=3e-2), "mismatch vs reference"

    print("KERNEL_OK")
</pallas_src>

<mosaic_0001>
module attributes {stable_mosaic.version = 11 : i64} {
  func.func @kernel(%arg0: i32, %arg1: memref<16x32xbf16, #tpu.memory_space<vmem>>, %arg2: memref<16x32xbf16, #tpu.memory_space<vmem>>, %arg3: memref<16x32xbf16, #tpu.memory_space<vmem>>, %arg4: memref<3x32x32xbf16, #tpu.memory_space<vmem>>, %arg5: memref<3x1x32xf32, #tpu.memory_space<vmem>>, %arg6: memref<32x32xbf16, #tpu.memory_space<vmem>>, %arg7: memref<1x32xf32, #tpu.memory_space<vmem>>, %arg8: memref<16x32xbf16, #tpu.memory_space<vmem>>, %arg9: memref<2x8x32xf32, #tpu.memory_space<vmem>>, %arg10: memref<2x8x32xf32, #tpu.memory_space<vmem>>, %arg11: memref<2x8x32xf32, #tpu.memory_space<vmem>>, %arg12: memref<16x32xbf16, #tpu.memory_space<vmem>>) attributes {dimension_semantics = [#tpu.dimension_semantics<parallel>], iteration_bounds = array<i64: 1>, scalar_prefetch = 0 : i64, scratch_operands = 4 : i64, tpu.core_type = #tpu.core_type<tc>, window_params = [{transform_indices = @transform_0, window_bounds = array<i64: 16, 32>}, {transform_indices = @transform_1, window_bounds = array<i64: 16, 32>}, {transform_indices = @transform_2, window_bounds = array<i64: 16, 32>}, {pipeline_mode = #tpu.pipeline_mode<synchronous>, transform_indices = @transform_3, window_bounds = array<i64: 3, 32, 32>}, {pipeline_mode = #tpu.pipeline_mode<synchronous>, transform_indices = @transform_4, window_bounds = array<i64: 3, 1, 32>}, {pipeline_mode = #tpu.pipeline_mode<synchronous>, transform_indices = @transform_5, window_bounds = array<i64: 32, 32>}, {pipeline_mode = #tpu.pipeline_mode<synchronous>, transform_indices = @transform_6, window_bounds = array<i64: 1, 32>}, {transform_indices = @transform_7, window_bounds = array<i64: 16, 32>}]} {
    %c0 = arith.constant 0 : index
    %c0_0 = arith.constant 0 : index
    %0 = vector.load %arg1[%c0, %c0_0] : memref<16x32xbf16, #tpu.memory_space<vmem>>, vector<16x32xbf16>
    %c0_1 = arith.constant 0 : index
    %c0_2 = arith.constant 0 : index
    %c0_3 = arith.constant 0 : index
    %1 = vector.load %arg4[%c0_1, %c0_2, %c0_3] : memref<3x32x32xbf16, #tpu.memory_space<vmem>>, vector<1x32x32xbf16>
    %2 = vector.shape_cast %1 : vector<1x32x32xbf16> to vector<32x32xbf16>
    %cst = arith.constant dense<0.000000e+00> : vector<16x32xf32>
    %3 = tpu.matmul %0, %2, %cst {dimension_numbers = #tpu.dot_dimension_numbers<[1], [0], [0], [1], [0, 0, 1, 1], [], []>} : vector<16x32xbf16>, vector<32x32xbf16>, vector<16x32xf32> -> vector<16x32xf32>
    %c0_4 = arith.constant 0 : index
    %c0_5 = arith.constant 0 : index
    %c0_6 = arith.constant 0 : index
    %4 = vector.load %arg5[%c0_4, %c0_5, %c0_6] : memref<3x1x32xf32, #tpu.memory_space<vmem>>, vector<1x1x32xf32>
    %5 = vector.shape_cast %4 : vector<1x1x32xf32> to vector<1x32xf32>
    %6 = vector.broadcast %5 : vector<1x32xf32> to vector<16x32xf32>
    %7 = arith.addf %3, %6 : vector<16x32xf32>
    %c0_7 = arith.constant 0 : index
    %c0_8 = arith.constant 0 : index
    %8 = vector.load %arg2[%c0_7, %c0_8] : memref<16x32xbf16, #tpu.memory_space<vmem>>, vector<16x32xbf16>
    %c1 = arith.constant 1 : index
    %c0_9 = arith.constant 0 : index
    %c0_10 = arith.constant 0 : index
    %9 = vector.load %arg4[%c1, %c0_9, %c0_10] : memref<3x32x32xbf16, #tpu.memory_space<vmem>>, vector<1x32x32xbf16>
    %10 = vector.shape_cast %9 : vector<1x32x32xbf16> to vector<32x32xbf16>
    %cst_11 = arith.constant dense<0.000000e+00> : vector<16x32xf32>
    %11 = tpu.matmul %8, %10, %cst_11 {dimension_numbers = #tpu.dot_dimension_numbers<[1], [0], [0], [1], [0, 0, 1, 1], [], []>} : vector<16x32xbf16>, vector<32x32xbf16>, vector<16x32xf32> -> vector<16x32xf32>
    %c1_12 = arith.constant 1 : index
    %c0_13 = arith.constant 0 : index
    %c0_14 = arith.constant 0 : index
    %12 = vector.load %arg5[%c1_12, %c0_13, %c0_14] : memref<3x1x32xf32, #tpu.memory_space<vmem>>, vector<1x1x32xf32>
    %13 = vector.shape_cast %12 : vector<1x1x32xf32> to vector<1x32xf32>
    %14 = vector.broadcast %13 : vector<1x32xf32> to vector<16x32xf32>
    %15 = arith.addf %11, %14 : vector<16x32xf32>
    %c0_15 = arith.constant 0 : index
    %c0_16 = arith.constant 0 : index
    %16 = vector.load %arg3[%c0_15, %c0_16] : memref<16x32xbf16, #tpu.memory_space<vmem>>, vector<16x32xbf16>
    %c2 = arith.constant 2 : index
    %c0_17 = arith.constant 0 : index
    %c0_18 = arith.constant 0 : index
    %17 = vector.load %arg4[%c2, %c0_17, %c0_18] : memref<3x32x32xbf16, #tpu.memory_space<vmem>>, vector<1x32x32xbf16>
    %18 = vector.shape_cast %17 : vector<1x32x32xbf16> to vector<32x32xbf16>
    %cst_19 = arith.constant dense<0.000000e+00> : vector<16x32xf32>
    %19 = tpu.matmul %16, %18, %cst_19 {dimension_numbers = #tpu.dot_dimension_numbers<[1], [0], [0], [1], [0, 0, 1, 1], [], []>} : vector<16x32xbf16>, vector<32x32xbf16>, vector<16x32xf32> -> vector<16x32xf32>
    %c2_20 = arith.constant 2 : index
    %c0_21 = arith.constant 0 : index
    %c0_22 = arith.constant 0 : index
    %20 = vector.load %arg5[%c2_20, %c0_21, %c0_22] : memref<3x1x32xf32, #tpu.memory_space<vmem>>, vector<1x1x32xf32>
    %21 = vector.shape_cast %20 : vector<1x1x32xf32> to vector<1x32xf32>
    %22 = vector.broadcast %21 : vector<1x32xf32> to vector<16x32xf32>
    %23 = arith.addf %19, %22 : vector<16x32xf32>
    %24 = vector.shape_cast %7 : vector<16x32xf32> to vector<2x8x32xf32>
    %c0_23 = arith.constant 0 : index
    %c0_24 = arith.constant 0 : index
    %c0_25 = arith.constant 0 : index
    %25 = vector.load %arg9[%c0_23, %c0_24, %c0_25] : memref<2x8x32xf32, #tpu.memory_space<vmem>>, vector<2x8x32xf32>
    tpu.vector_store %arg9[%c0_23, %c0_24, %c0_25], %24 {strides = array<i32>} : memref<2x8x32xf32, #tpu.memory_space<vmem>>, vector<2x8x32xf32>,
    %26 = vector.shape_cast %15 : vector<16x32xf32> to vector<2x8x32xf32>
    %c0_26 = arith.constant 0 : index
    %c0_27 = arith.constant 0 : index
    %c0_28 = arith.constant 0 : index
    %27 = vector.load %arg10[%c0_26, %c0_27, %c0_28] : memref<2x8x32xf32, #tpu.memory_space<vmem>>, vector<2x8x32xf32>
    tpu.vector_store %arg10[%c0_26, %c0_27, %c0_28], %26 {strides = array<i32>} : memref<2x8x32xf32, #tpu.memory_space<vmem>>, vector<2x8x32xf32>,
    %28 = vector.shape_cast %23 : vector<16x32xf32> to vector<2x8x32xf32>
    %c0_29 = arith.constant 0 : index
    %c0_30 = arith.constant 0 : index
    %c0_31 = arith.constant 0 : index
    %29 = vector.load %arg11[%c0_29, %c0_30, %c0_31] : memref<2x8x32xf32, #tpu.memory_space<vmem>>, vector<2x8x32xf32>
    tpu.vector_store %arg11[%c0_29, %c0_30, %c0_31], %28 {strides = array<i32>} : memref<2x8x32xf32, #tpu.memory_space<vmem>>, vector<2x8x32xf32>,
    %c0_32 = arith.constant 0 : index
    %c0_33 = arith.constant 0 : index
    %c0_34 = arith.constant 0 : index
    %30 = vector.load %arg9[%c0_32, %c0_33, %c0_34] : memref<2x8x32xf32, #tpu.memory_space<vmem>>, vector<2x8x8xf32>
    %c0_35 = arith.constant 0 : index
    %c0_36 = arith.constant 0 : index
    %c0_37 = arith.constant 0 : index
    %31 = vector.load %arg10[%c0_35, %c0_36, %c0_37] : memref<2x8x32xf32, #tpu.memory_space<vmem>>, vector<2x8x8xf32>
    %c0_38 = arith.constant 0 : index
    %c0_39 = arith.constant 0 : index
    %c0_40 = arith.constant 0 : index
    %32 = vector.load %arg11[%c0_38, %c0_39, %c0_40] : memref<2x8x32xf32, #tpu.memory_space<vmem>>, vector<2x8x8xf32>
    "tpu.trace_start"() <{level = 10 : i32, message = "bqd,bkd->bqk"}> : () -> ()
    %cst_41 = arith.constant dense<0.000000e+00> : vector<2x8x8xf32>
    %33 = tpu.matmul %30, %31, %cst_41 {dimension_numbers = #tpu.dot_dimension_numbers<[2], [2], [1], [1], [0, 0, 0, 1, 1, 1], [0], [0]>} : vector<2x8x8xf32>, vector<2x8x8xf32>, vector<2x8x8xf32> -> vector<2x8x8xf32>
    "tpu.trace_stop"() : () -> ()
    %cst_42 = arith.constant dense<0xFF800000> : vector<2x8xf32>
    %34 = vector.multi_reduction <maximumf>, %33, %cst_42 [2] : vector<2x8x8xf32> to vector<2x8xf32>
    %35 = vector.shape_cast %34 : vector<2x8xf32> to vector<2x8x1xf32>
    %36 = vector.broadcast %35 : vector<2x8x1xf32> to vector<2x8x8xf32>
    %37 = arith.subf %33, %36 : vector<2x8x8xf32>
    %38 = math.exp %37 : vector<2x8x8xf32>
    %cst_43 = arith.constant dense<0.000000e+00> : vector<2x8xf32>
    %39 = vector.multi_reduction <add>, %38, %cst_43 [2] : vector<2x8x8xf32> to vector<2x8xf32>
    %40 = vector.shape_cast %39 : vector<2x8xf32> to vector<2x8x1xf32>
    %41 = tpu.reciprocal %40 {approx = true} : vector<2x8x1xf32> -> vector<2x8x1xf32>
    %42 = vector.broadcast %41 : vector<2x8x1xf32> to vector<2x8x8xf32>
    %43 = arith.mulf %38, %42 : vector<2x8x8xf32>
    "tpu.trace_start"() <{level = 10 : i32, message = "bqk,bkd->bqd"}> : () -> ()
    %cst_44 = arith.constant dense<0.000000e+00> : vector<2x8x8xf32>
    %44 = tpu.matmul %43, %32, %cst_44 {dimension_numbers = #tpu.dot_dimension_numbers<[2], [1], [1], [2], [0, 0, 0, 1, 1, 2], [0], [0]>} : vector<2x8x8xf32>, vector<2x8x8xf32>, vector<2x8x8xf32> -> vector<2x8x8xf32>
    "tpu.trace_stop"() : () -> ()
    %45 = vector.shape_cast %44 : vector<2x8x8xf32> to vector<16x8xf32>
    %46 = arith.truncf %45 : vector<16x8xf32> to vector<16x8xbf16>
    %c0_45 = arith.constant 0 : index
    %c0_46 = arith.constant 0 : index
    %47 = vector.load %arg12[%c0_45, %c0_46] : memref<16x32xbf16, #tpu.memory_space<vmem>>, vector<16x8xbf16>
    tpu.vector_store %arg12[%c0_45, %c0_46], %46 {strides = array<i32>} : memref<16x32xbf16, #tpu.memory_space<vmem>>, vector<16x8xbf16>,
    %c0_47 = arith.constant 0 : index
    %c0_48 = arith.constant 0 : index
    %c8 = arith.constant 8 : index
    %48 = vector.load %arg9[%c0_47, %c0_48, %c8] : memref<2x8x32xf32, #tpu.memory_space<vmem>>, vector<2x8x8xf32>
    %c0_49 = arith.constant 0 : index
    %c0_50 = arith.constant 0 : index
    %c8_51 = arith.constant 8 : index
    %49 = vector.load %arg10[%c0_49, %c0_50, %c8_51] : memref<2x8x32xf32, #tpu.memory_space<vmem>>, vector<2x8x8xf32>
    %c0_52 = arith.constant 0 : index
    %c0_53 = arith.constant 0 : index
    %c8_54 = arith.constant 8 : index
    %50 = vector.load %arg11[%c0_52, %c0_53, %c8_54] : memref<2x8x32xf32, #tpu.memory_space<vmem>>, vector<2x8x8xf32>
    "tpu.trace_start"() <{level = 10 : i32, message = "bqd,bkd->bqk"}> : () -> ()
    %cst_55 = arith.constant dense<0.000000e+00> : vector<2x8x8xf32>
    %51 = tpu.matmul %48, %49, %cst_55 {dimension_numbers = #tpu.dot_dimension_numbers<[2], [2], [1], [1], [0, 0, 0, 1, 1, 1], [0], [0]>} : vector<2x8x8xf32>, vector<2x8x8xf32>, vector<2x8x8xf32> -> vector<2x8x8xf32>
    "tpu.trace_stop"() : () -> ()
    %cst_56 = arith.constant dense<0xFF800000> : vector<2x8xf32>
    %52 = vector.multi_reduction <maximumf>, %51, %cst_56 [2] : vector<2x8x8xf32> to vector<2x8xf32>
    %53 = vector.shape_cast %52 : vector<2x8xf32> to vector<2x8x1xf32>
    %54 = vector.broadcast %53 : vector<2x8x1xf32> to vector<2x8x8xf32>
    %55 = arith.subf %51, %54 : vector<2x8x8xf32>
    %56 = math.exp %55 : vector<2x8x8xf32>
    %cst_57 = arith.constant dense<0.000000e+00> : vector<2x8xf32>
    %57 = vector.multi_reduction <add>, %56, %cst_57 [2] : vector<2x8x8xf32> to vector<2x8xf32>
    %58 = vector.shape_cast %57 : vector<2x8xf32> to vector<2x8x1xf32>
    %59 = tpu.reciprocal %58 {approx = true} : vector<2x8x1xf32> -> vector<2x8x1xf32>
    %60 = vector.broadcast %59 : vector<2x8x1xf32> to vector<2x8x8xf32>
    %61 = arith.mulf %56, %60 : vector<2x8x8xf32>
    "tpu.trace_start"() <{level = 10 : i32, message = "bqk,bkd->bqd"}> : () -> ()
    %cst_58 = arith.constant dense<0.000000e+00> : vector<2x8x8xf32>
    %62 = tpu.matmul %61, %50, %cst_58 {dimension_numbers = #tpu.dot_dimension_numbers<[2], [1], [1], [2], [0, 0, 0, 1, 1, 2], [0], [0]>} : vector<2x8x8xf32>, vector<2x8x8xf32>, vector<2x8x8xf32> -> vector<2x8x8xf32>
    "tpu.trace_stop"() : () -> ()
    %63 = vector.shape_cast %62 : vector<2x8x8xf32> to vector<16x8xf32>
    %64 = arith.truncf %63 : vector<16x8xf32> to vector<16x8xbf16>
    %c0_59 = arith.constant 0 : index
    %c8_60 = arith.constant 8 : index
    %65 = vector.load %arg12[%c0_59, %c8_60] : memref<16x32xbf16, #tpu.memory_space<vmem>>, vector<16x8xbf16>
    tpu.vector_store %arg12[%c0_59, %c8_60], %64 {strides = array<i32>} : memref<16x32xbf16, #tpu.memory_space<vmem>>, vector<16x8xbf16>,
    %c0_61 = arith.constant 0 : index
    %c0_62 = arith.constant 0 : index
    %c16 = arith.constant 16 : index
    %66 = vector.load %arg9[%c0_61, %c0_62, %c16] : memref<2x8x32xf32, #tpu.memory_space<vmem>>, vector<2x8x8xf32>
    %c0_63 = arith.constant 0 : index
    %c0_64 = arith.constant 0 : index
    %c16_65 = arith.constant 16 : index
    %67 = vector.load %arg10[%c0_63, %c0_64, %c16_65] : memref<2x8x32xf32, #tpu.memory_space<vmem>>, vector<2x8x8xf32>
    %c0_66 = arith.constant 0 : index
    %c0_67 = arith.constant 0 : index
    %c16_68 = arith.constant 16 : index
    %68 = vector.load %arg11[%c0_66, %c0_67, %c16_68] : memref<2x8x32xf32, #tpu.memory_space<vmem>>, vector<2x8x8xf32>
    "tpu.trace_start"() <{level = 10 : i32, message = "bqd,bkd->bqk"}> : () -> ()
    %cst_69 = arith.constant dense<0.000000e+00> : vector<2x8x8xf32>
    %69 = tpu.matmul %66, %67, %cst_69 {dimension_numbers = #tpu.dot_dimension_numbers<[2], [2], [1], [1], [0, 0, 0, 1, 1, 1], [0], [0]>} : vector<2x8x8xf32>, vector<2x8x8xf32>, vector<2x8x8xf32> -> vector<2x8x8xf32>
    "tpu.trace_stop"() : () -> ()
    %cst_70 = arith.constant dense<0xFF800000> : vector<2x8xf32>
    %70 = vector.multi_reduction <maximumf>, %69, %cst_70 [2] : vector<2x8x8xf32> to vector<2x8xf32>
    %71 = vector.shape_cast %70 : vector<2x8xf32> to vector<2x8x1xf32>
    %72 = vector.broadcast %71 : vector<2x8x1xf32> to vector<2x8x8xf32>
    %73 = arith.subf %69, %72 : vector<2x8x8xf32>
    %74 = math.exp %73 : vector<2x8x8xf32>
    %cst_71 = arith.constant dense<0.000000e+00> : vector<2x8xf32>
    %75 = vector.multi_reduction <add>, %74, %cst_71 [2] : vector<2x8x8xf32> to vector<2x8xf32>
    %76 = vector.shape_cast %75 : vector<2x8xf32> to vector<2x8x1xf32>
    %77 = tpu.reciprocal %76 {approx = true} : vector<2x8x1xf32> -> vector<2x8x1xf32>
    %78 = vector.broadcast %77 : vector<2x8x1xf32> to vector<2x8x8xf32>
    %79 = arith.mulf %74, %78 : vector<2x8x8xf32>
    "tpu.trace_start"() <{level = 10 : i32, message = "bqk,bkd->bqd"}> : () -> ()
    %cst_72 = arith.constant dense<0.000000e+00> : vector<2x8x8xf32>
    %80 = tpu.matmul %79, %68, %cst_72 {dimension_numbers = #tpu.dot_dimension_numbers<[2], [1], [1], [2], [0, 0, 0, 1, 1, 2], [0], [0]>} : vector<2x8x8xf32>, vector<2x8x8xf32>, vector<2x8x8xf32> -> vector<2x8x8xf32>
    "tpu.trace_stop"() : () -> ()
    %81 = vector.shape_cast %80 : vector<2x8x8xf32> to vector<16x8xf32>
    %82 = arith.truncf %81 : vector<16x8xf32> to vector<16x8xbf16>
    %c0_73 = arith.constant 0 : index
    %c16_74 = arith.constant 16 : index
    %83 = vector.load %arg12[%c0_73, %c16_74] : memref<16x32xbf16, #tpu.memory_space<vmem>>, vector<16x8xbf16>
    tpu.vector_store %arg12[%c0_73, %c16_74], %82 {strides = array<i32>} : memref<16x32xbf16, #tpu.memory_space<vmem>>, vector<16x8xbf16>,
    %c0_75 = arith.constant 0 : index
    %c0_76 = arith.constant 0 : index
    %c24 = arith.constant 24 : index
    %84 = vector.load %arg9[%c0_75, %c0_76, %c24] : memref<2x8x32xf32, #tpu.memory_space<vmem>>, vector<2x8x8xf32>
    %c0_77 = arith.constant 0 : index
    %c0_78 = arith.constant 0 : index
    %c24_79 = arith.constant 24 : index
    %85 = vector.load %arg10[%c0_77, %c0_78, %c24_79] : memref<2x8x32xf32, #tpu.memory_space<vmem>>, vector<2x8x8xf32>
    %c0_80 = arith.constant 0 : index
    %c0_81 = arith.constant 0 : index
    %c24_82 = arith.constant 24 : index
    %86 = vector.load %arg11[%c0_80, %c0_81, %c24_82] : memref<2x8x32xf32, #tpu.memory_space<vmem>>, vector<2x8x8xf32>
    "tpu.trace_start"() <{level = 10 : i32, message = "bqd,bkd->bqk"}> : () -> ()
    %cst_83 = arith.constant dense<0.000000e+00> : vector<2x8x8xf32>
    %87 = tpu.matmul %84, %85, %cst_83 {dimension_numbers = #tpu.dot_dimension_numbers<[2], [2], [1], [1], [0, 0, 0, 1, 1, 1], [0], [0]>} : vector<2x8x8xf32>, vector<2x8x8xf32>, vector<2x8x8xf32> -> vector<2x8x8xf32>
    "tpu.trace_stop"() : () -> ()
    %cst_84 = arith.constant dense<0xFF800000> : vector<2x8xf32>
    %88 = vector.multi_reduction <maximumf>, %87, %cst_84 [2] : vector<2x8x8xf32> to vector<2x8xf32>
    %89 = vector.shape_cast %88 : vector<2x8xf32> to vector<2x8x1xf32>
    %90 = vector.broadcast %89 : vector<2x8x1xf32> to vector<2x8x8xf32>
    %91 = arith.subf %87, %90 : vector<2x8x8xf32>
    %92 = math.exp %91 : vector<2x8x8xf32>
    %cst_85 = arith.constant dense<0.000000e+00> : vector<2x8xf32>
    %93 = vector.multi_reduction <add>, %92, %cst_85 [2] : vector<2x8x8xf32> to vector<2x8xf32>
    %94 = vector.shape_cast %93 : vector<2x8xf32> to vector<2x8x1xf32>
    %95 = tpu.reciprocal %94 {approx = true} : vector<2x8x1xf32> -> vector<2x8x1xf32>
    %96 = vector.broadcast %95 : vector<2x8x1xf32> to vector<2x8x8xf32>
    %97 = arith.mulf %92, %96 : vector<2x8x8xf32>
    "tpu.trace_start"() <{level = 10 : i32, message = "bqk,bkd->bqd"}> : () -> ()
    %cst_86 = arith.constant dense<0.000000e+00> : vector<2x8x8xf32>
    %98 = tpu.matmul %97, %86, %cst_86 {dimension_numbers = #tpu.dot_dimension_numbers<[2], [1], [1], [2], [0, 0, 0, 1, 1, 2], [0], [0]>} : vector<2x8x8xf32>, vector<2x8x8xf32>, vector<2x8x8xf32> -> vector<2x8x8xf32>
    "tpu.trace_stop"() : () -> ()
    %99 = vector.shape_cast %98 : vector<2x8x8xf32> to vector<16x8xf32>
    %100 = arith.truncf %99 : vector<16x8xf32> to vector<16x8xbf16>
    %c0_87 = arith.constant 0 : index
    %c24_88 = arith.constant 24 : index
    %101 = vector.load %arg12[%c0_87, %c24_88] : memref<16x32xbf16, #tpu.memory_space<vmem>>, vector<16x8xbf16>
    tpu.vector_store %arg12[%c0_87, %c24_88], %100 {strides = array<i32>} : memref<16x32xbf16, #tpu.memory_space<vmem>>, vector<16x8xbf16>,
    %c0_89 = arith.constant 0 : index
    %c0_90 = arith.constant 0 : index
    %102 = vector.load %arg12[%c0_89, %c0_90] : memref<16x32xbf16, #tpu.memory_space<vmem>>, vector<16x32xbf16>
    %c0_91 = arith.constant 0 : index
    %c0_92 = arith.constant 0 : index
    %103 = vector.load %arg6[%c0_91, %c0_92] : memref<32x32xbf16, #tpu.memory_space<vmem>>, vector<32x32xbf16>
    %cst_93 = arith.constant dense<0.000000e+00> : vector<16x32xf32>
    %104 = tpu.matmul %102, %103, %cst_93 {dimension_numbers = #tpu.dot_dimension_numbers<[1], [0], [0], [1], [0, 0, 1, 1], [], []>} : vector<16x32xbf16>, vector<32x32xbf16>, vector<16x32xf32> -> vector<16x32xf32>
    %c0_94 = arith.constant 0 : index
    %c0_95 = arith.constant 0 : index
    %105 = vector.load %arg7[%c0_94, %c0_95] : memref<1x32xf32, #tpu.memory_space<vmem>>, vector<1x32xf32>
    %106 = vector.broadcast %105 : vector<1x32xf32> to vector<16x32xf32>
    %107 = arith.addf %104, %106 : vector<16x32xf32>
    %108 = arith.truncf %107 : vector<16x32xf32> to vector<16x32xbf16>
    %c0_96 = arith.constant 0 : index
    %c0_97 = arith.constant 0 : index
    %109 = vector.load %arg8[%c0_96, %c0_97] : memref<16x32xbf16, #tpu.memory_space<vmem>>, vector<16x32xbf16>
    tpu.vector_store %arg8[%c0_96, %c0_97], %108 {strides = array<i32>} : memref<16x32xbf16, #tpu.memory_space<vmem>>, vector<16x32xbf16>,
    return
  }
  func.func @transform_0(%arg0: i32) -> (i32, i32) {
    %c0_i32 = arith.constant 0 : i32
    %c0_i32_0 = arith.constant 0 : i32
    return %arg0, %c0_i32 : i32, i32
  }
  func.func @transform_1(%arg0: i32) -> (i32, i32) {
    %c0_i32 = arith.constant 0 : i32
    %c0_i32_0 = arith.constant 0 : i32
    return %arg0, %c0_i32 : i32, i32
  }
  func.func @transform_2(%arg0: i32) -> (i32, i32) {
    %c0_i32 = arith.constant 0 : i32
    %c0_i32_0 = arith.constant 0 : i32
    return %arg0, %c0_i32 : i32, i32
  }
  func.func @transform_3(%arg0: i32) -> (i32, i32, i32) {
    %c0_i32 = arith.constant 0 : i32
    %c0_i32_0 = arith.constant 0 : i32
    %c0_i32_1 = arith.constant 0 : i32
    %c0_i32_2 = arith.constant 0 : i32
    return %c0_i32, %c0_i32_0, %c0_i32_1 : i32, i32, i32
  }
  func.func @transform_4(%arg0: i32) -> (i32, i32, i32) {
    %c0_i32 = arith.constant 0 : i32
    %c0_i32_0 = arith.constant 0 : i32
    %c0_i32_1 = arith.constant 0 : i32
    %c0_i32_2 = arith.constant 0 : i32
    return %c0_i32, %c0_i32_0, %c0_i32_1 : i32, i32, i32
  }
  func.func @transform_5(%arg0: i32) -> (i32, i32) {
    %c0_i32 = arith.constant 0 : i32
    %c0_i32_0 = arith.constant 0 : i32
    %c0_i32_1 = arith.constant 0 : i32
    return %c0_i32, %c0_i32_0 : i32, i32
  }
  func.func @transform_6(%arg0: i32) -> (i32, i32) {
    %c0_i32 = arith.constant 0 : i32
    %c0_i32_0 = arith.constant 0 : i32
    %c0_i32_1 = arith.constant 0 : i32
    return %c0_i32, %c0_i32_0 : i32, i32
  }
  func.func @transform_7(%arg0: i32) -> (i32, i32) {
    %c0_i32 = arith.constant 0 : i32
    %c0_i32_0 = arith.constant 0 : i32
    return %arg0, %c0_i32 : i32, i32
  }
}

</mosaic_0001>

<llo_original>
// kernel: tpu_custom_call.1
$region0: #{tpu_custom_call.1}
  #allocation0 [shape = 'u32[]', space=smem, size = 0x4, offset = 0x4, fixed_abs, tag = 'smem constant byte address 0x4 - core index']
  #allocation1 [shape = 'u32[144,128]{1,0:T(1,128)}', space=vmem, size = 0x12000, scoped, tag = 'internal scratch']
  #allocation2 [shape = 'f32[2,8,32]{2,1,0:T(8,128)}', space=vmem, size = 0x2000, scoped, tag = 'scratch operand']
  #allocation3 [shape = 'f32[2,8,32]{2,1,0:T(8,128)}', space=vmem, size = 0x2000, scoped, tag = 'scratch operand']
  #allocation4 [shape = 'f32[2,8,32]{2,1,0:T(8,128)}', space=vmem, size = 0x2000, scoped, tag = 'scratch operand']
  #allocation5 [shape = 'bf16[16,32]{1,0:T(16,128)(2,1)}', space=vmem, size = 0x1000, scoped, tag = 'scratch operand']
  %s0 = inlined_call_operand.hbm [shape: bf16[16,32], index: 0, kind: input, shape index: {}]
  %s1 = inlined_call_operand.hbm [shape: bf16[16,32], index: 1, kind: input, shape index: {}]
  %s2 = inlined_call_operand.hbm [shape: bf16[16,32], index: 2, kind: input, shape index: {}]
  %s3 = inlined_call_operand.hbm [shape: bf16[3,32,32], index: 3, kind: input, shape index: {}]
  %s4 = inlined_call_operand.hbm [shape: f32[3,1,32], index: 4, kind: input, shape index: {}]
  %s5 = inlined_call_operand.vmem [shape: bf16[32,32], index: 5, kind: input, shape index: {}]
  %s6 = inlined_call_operand.vmem [shape: f32[1,32], index: 6, kind: input, shape index: {}]
  %s7 = inlined_call_operand.hbm [shape: bf16[16,32], index: 7, kind: output, shape index: {}]
  %s8 = sld [smem:[#allocation0]]
  $region58: #{tpu_custom_call.1} parent=0
    _
  %s10 = ssub.s32 1, %s8
  %s11 = scalar_select 0, %s10, %s8
  $region1: #{tpu_custom_call.1} parent=0
    #allocation6 [shape = 'u8[4096]{0}', space=vmem, size = 0x1000, scoped, tag = 'input window, operand 0, single buffered']
    #allocation7 [shape = 's32[1]{0}', space=sflag, size = 0x4, scoped, tag = 'scoped memory for tpu_custom_call.1']
    #allocation8 [shape = 's32[1]{0}', space=sflag, size = 0x4, scoped, tag = 'scoped memory for tpu_custom_call.1']
    #allocation9 [shape = 'u8[4096]{0}', space=vmem, size = 0x1000, scoped, tag = 'input window, operand 1, single buffered']
    #allocation10 [shape = 's32[1]{0}', space=sflag, size = 0x4, scoped, tag = 'scoped memory for tpu_custom_call.1']
    #allocation11 [shape = 'u8[4096]{0}', space=vmem, size = 0x1000, scoped, tag = 'input window, operand 2, single buffered']
    #allocation12 [shape = 'u8[24576]{0}', space=vmem, size = 0x6000, scoped, tag = 'input window, operand 3, single buffered']
    #allocation13 [shape = 's32[1]{0}', space=sflag, size = 0x4, scoped, tag = 'scoped memory for tpu_custom_call.1']
    #allocation14 [shape = 'u8[1536]{0}', space=vmem, size = 0x800, scoped, tag = 'input window, operand 4, single buffered']
    #allocation15 [shape = 'u8[4096]{0}', space=vmem, size = 0x1000, scoped, tag = 'output window, operand 0, single buffered']
    %12 = vsyncpa [#allocation7], 0
    %13 = vsyncpa [#allocation10], 0
    %14 = vsyncpa [#allocation13], 0
    %15 = vsyncpa [#allocation8], 0
    // Predicated region
    $region2: #{tpu_custom_call.1} parent=1 // pred_check
      _
    $region3: #{tpu_custom_call.1} parent=1 // pred_check_branch
      %17 = sbr.rel (0) target = $region5
    $region4: #{tpu_custom_call.1} parent=1 // pred_region
      %s19 = ssub.s32 128, 128
      %20 = vsyncadd [#allocation7], %s19
      %s21 = sshll.u32 [#allocation6], 4
      %s22 = int_to_ptr.vmem [resolvable:$true] %s21
      %27 = dma.hbm_to_vmem [thread:$0]  %s0, 128, %s22, [#allocation7], 64, 64, 4
    $region5: #{tpu_custom_call.1} parent=1 // pred_fallthru
      _
    // Predicated region
    $region6: #{tpu_custom_call.1} parent=1 // pred_check
      _
    $region7: #{tpu_custom_call.1} parent=1 // pred_check_branch
      %29 = sbr.rel (0) target = $region9
    $region8: #{tpu_custom_call.1} parent=1 // pred_region
      %s31 = ssub.s32 128, 128
      %32 = vsyncadd [#allocation10], %s31
      %s33 = sshll.u32 [#allocation9], 4
      %s34 = int_to_ptr.vmem [resolvable:$true] %s33
      %39 = dma.hbm_to_vmem [thread:$0]  %s1, 128, %s34, [#allocation10], 64, 64, 4
    $region9: #{tpu_custom_call.1} parent=1 // pred_fallthru
      _
    // Predicated region
    $region10: #{tpu_custom_call.1} parent=1 // pred_check
      _
    $region11: #{tpu_custom_call.1} parent=1 // pred_check_branch
      %41 = sbr.rel (0) target = $region13
    $region12: #{tpu_custom_call.1} parent=1 // pred_region
      %s43 = ssub.s32 128, 128
      %44 = vsyncadd [#allocation10], %s43
      %s45 = sshll.u32 [#allocation11], 4
      %s46 = int_to_ptr.vmem [resolvable:$true] %s45
      %51 = dma.hbm_to_vmem [thread:$0]  %s2, 128, %s46, [#allocation10], 64, 64, 4
    $region13: #{tpu_custom_call.1} parent=1 // pred_fallthru
      _
    // Predicated region
    $region14: #{tpu_custom_call.1} parent=1 // pred_check
      _
    $region15: #{tpu_custom_call.1} parent=1 // pred_check_branch
      %53 = sbr.rel (0) target = $region17
    $region16: #{tpu_custom_call.1} parent=1 // pred_region
      %s55 = ssub.s32 768, 768
      %56 = vsyncadd [#allocation13], %s55
      %s57 = sshll.u32 [#allocation12], 4
      %s58 = int_to_ptr.vmem [resolvable:$true] %s57
      %63 = dma.hbm_to_vmem [thread:$0]  %s3, 768, %s58, [#allocation13], 64, 64, 4
    $region17: #{tpu_custom_call.1} parent=1 // pred_fallthru
      _
    // Predicated region
    $region18: #{tpu_custom_call.1} parent=1 // pred_check
      _
    $region19: #{tpu_custom_call.1} parent=1 // pred_check_branch
      %65 = sbr.rel (0) target = $region21
    $region20: #{tpu_custom_call.1} parent=1 // pred_region
      %s67 = ssub.s32 48, 48
      %68 = vsyncadd [#allocation13], %s67
      %s69 = sshll.u32 [#allocation14], 4
      %s70 = int_to_ptr.vmem [resolvable:$true] %s69
      %75 = dma.hbm_to_vmem [thread:$0]  %s4, 48, %s70, [#allocation13], 16, 16, 1
    $region21: #{tpu_custom_call.1} parent=1 // pred_fallthru
      _
    // Predicated region
    $region22: #{tpu_custom_call.1} parent=1 // pred_check
      _
    $region23: #{tpu_custom_call.1} parent=1 // pred_check_branch
      %77 = sbr.rel (0) target = $region25
    $region24: #{tpu_custom_call.1} parent=1 // pred_region
      _
    $region25: #{tpu_custom_call.1} parent=1 // pred_fallthru
      _
    // Predicated region
    $region26: #{tpu_custom_call.1} parent=1 // pred_check
      _
    $region27: #{tpu_custom_call.1} parent=1 // pred_check_branch
      %79 = sbr.rel (0) target = $region29
    $region28: #{tpu_custom_call.1} parent=1 // pred_region
      _
    $region29: #{tpu_custom_call.1} parent=1 // pred_fallthru
      _
    // Predicated region
    $region30: #{tpu_custom_call.1} parent=1 // pred_check
      _
    $region31: #{tpu_custom_call.1} parent=1 // pred_check_branch
      %81 = sbr.rel (0) target = $region33
    $region32: #{tpu_custom_call.1} parent=1 // pred_region
      %82 = dma.done [#allocation7], 128
    $region33: #{tpu_custom_call.1} parent=1 // pred_fallthru
      _
    // Predicated region
    $region34: #{tpu_custom_call.1} parent=1 // pred_check
      _
    $region35: #{tpu_custom_call.1} parent=1 // pred_check_branch
      %84 = sbr.rel (0) target = $region37
    $region36: #{tpu_custom_call.1} parent=1 // pred_region
      %85 = dma.done [#allocation10], 128
    $region37: #{tpu_custom_call.1} parent=1 // pred_fallthru
      _
    // Predicated region
    $region38: #{tpu_custom_call.1} parent=1 // pred_check
      _
    $region39: #{tpu_custom_call.1} parent=1 // pred_check_branch
      %87 = sbr.rel (0) target = $region41
    $region40: #{tpu_custom_call.1} parent=1 // pred_region
      %88 = dma.done [#allocation10], 128
    $region41: #{tpu_custom_call.1} parent=1 // pred_fallthru
      _
    // Predicated region
    $region42: #{tpu_custom_call.1} parent=1 // pred_check
      _
    $region43: #{tpu_custom_call.1} parent=1 // pred_check_branch
      %90 = sbr.rel (0) target = $region45
    $region44: #{tpu_custom_call.1} parent=1 // pred_region
      %91 = dma.done [#allocation13], 768
    $region45: #{tpu_custom_call.1} parent=1 // pred_fallthru
      _
    // Predicated region
    $region46: #{tpu_custom_call.1} parent=1 // pred_check
      _
    $region47: #{tpu_custom_call.1} parent=1 // pred_check_branch
      %93 = sbr.rel (0) target = $region49
    $region48: #{tpu_custom_call.1} parent=1 // pred_region
      %94 = dma.done [#allocation13], 48
    $region49: #{tpu_custom_call.1} parent=1 // pred_fallthru
      _
    %v96 = vld [vmem:[#allocation6] sm:$0xf]
    %v97 = vld [vmem:[#allocation6 + $0x4] sm:$0xf]
    %v98 = vld [vmem:[#allocation12] sm:$0xf]
    %v99 = vld [vmem:[#allocation12 + $0x4] sm:$0xf]
    %v100 = vld [vmem:[#allocation12 + $0x8] sm:$0xf]
    %v101 = vld [vmem:[#allocation12 + $0xc] sm:$0xf]
    %v102 = vld [vmem:[#allocation14] sm:$0x1]
    %v104 = vlaneseq
    %v105 = vshrl.u32 %v104, 7
    %v106 = vsub.s32 0, %v105
    %v107 = vrot.slane %v102, %v106
    %v111 = vunpack.c.l.b16 %v96
    %v112 = vunpack.c.l.b16 %v97
    %v113 = vpack.c.b16 %v112, %v111
    %v118 = vunpack.c.l.b16 %v98
    %v119 = vunpack.c.l.b16 %v99
    %v120 = vunpack.c.l.b16 %v100
    %v121 = vunpack.c.l.b16 %v101
    %v122 = vpack.c.b16 %v119, %v118
    %v123 = vpack.c.b16 %v121, %v120
    %vm126 = vcmask 261120
    %v128 = vsel %vm126, %v113, 0
    %130 = vmatprep.subr.bf16.mxu0 0
    %131 = vmatpush1.bf16.msra.mxu0 %v122
    %132 = vmatprep.subr.bf16.mxu0 0
    %133 = vmatpush1.bf16.msra.mxu0 %v123
    %134 = vmatprep.subr.bf16.mxu0 0
    %135 = vmatpush1.bf16.msra.mxu0 0
    %136 = vmatprep.subr.bf16.mxu0 0
    %137 = vmatpush1.bf16.msra.mxu0 0
    %138 = vmatprep.subr.bf16.mxu0 0
    %139 = vmatpush1.bf16.msra.mxu0 0
    %140 = vmatprep.subr.bf16.mxu0 0
    %141 = vmatpush1.bf16.msra.mxu0 0
    %142 = vmatprep.subr.bf16.mxu0 0
    %143 = vmatpush1.bf16.msra.mxu0 0
    %144 = vmatprep.subr.bf16.mxu0 0
    %145 = vmatpush1.bf16.msra.mxu0 0
    %146 = vmatprep.subr.bf16.mxu0 0
    %147 = vmatpush1.bf16.msra.mxu0 0
    %148 = vmatprep.subr.bf16.mxu0 0
    %149 = vmatpush1.bf16.msra.mxu0 0
    %150 = vmatprep.subr.bf16.mxu0 0
    %151 = vmatpush1.bf16.msra.mxu0 0
    %152 = vmatprep.subr.bf16.mxu0 0
    %153 = vmatpush1.bf16.msra.mxu0 0
    %154 = vmatprep.subr.bf16.mxu0 0
    %155 = vmatpush1.bf16.msra.mxu0 0
    %156 = vmatprep.subr.bf16.mxu0 0
    %157 = vmatpush1.bf16.msra.mxu0 0
    %158 = vmatprep.subr.bf16.mxu0 0
    %159 = vmatpush1.bf16.msra.mxu0 0
    %160 = vmatprep.subr.bf16.mxu0 0
    %161 = vmatpush1.bf16.msra.mxu0 0
    %162 = vmatprep.mubr.bf16.mxu0 0
    %163 = vmatmul.mubr.bf16.gmra.mrb[0].mxu0 %v128
    %v164 = vpop.f32.mrb[0].mxu0
    %v165 = vadd.f32 %v107, %v164
    %v166 = vpop.f32.mrb[0].mxu0
    %v167 = vpop.f32.mrb[0].mxu0
    %v168 = vadd.f32 %v107, %v167
    %v169 = vpop.f32.mrb[0].mxu0
    %170 = vdwg.mxu0
    %v171 = vld [vmem:[#allocation9] sm:$0xf]
    %v172 = vld [vmem:[#allocation9 + $0x4] sm:$0xf]
    %s173 = scalar_lea.vmem [#allocation12], 16
    %v174 = vld [vmem:[%s173] sm:$0xf]
    %v175 = vld [vmem:[%s173 + $0x4] sm:$0xf]
    %v176 = vld [vmem:[%s173 + $0x8] sm:$0xf]
    %v177 = vld [vmem:[%s173 + $0xc] sm:$0xf]
    %s178 = scalar_lea.vmem [#allocation14], 1
    %v179 = vld [vmem:[%s178] sm:$0x1]
    %v181 = vlaneseq
    %v182 = vshrl.u32 %v181, 7
    %v183 = vsub.s32 0, %v182
    %v184 = vrot.slane %v179, %v183
    %v188 = vunpack.c.l.b16 %v171
    %v189 = vunpack.c.l.b16 %v172
    %v190 = vpack.c.b16 %v189, %v188
    %v195 = vunpack.c.l.b16 %v174
    %v196 = vunpack.c.l.b16 %v175
    %v197 = vunpack.c.l.b16 %v176
    %v198 = vunpack.c.l.b16 %v177
    %v199 = vpack.c.b16 %v196, %v195
    %v200 = vpack.c.b16 %v198, %v197
    %v204 = vsel %vm126, %v190, 0
    %206 = vmatprep.subr.bf16.mxu0 0
    %207 = vmatpush1.bf16.msra.mxu0 %v199
    %208 = vmatprep.subr.bf16.mxu0 0
    %209 = vmatpush1.bf16.msra.mxu0 %v200
    %210 = vmatprep.subr.bf16.mxu0 0
    %211 = vmatpush1.bf16.msra.mxu0 0
    %212 = vmatprep.subr.bf16.mxu0 0
    %213 = vmatpush1.bf16.msra.mxu0 0
    %214 = vmatprep.subr.bf16.mxu0 0
    %215 = vmatpush1.bf16.msra.mxu0 0
    %216 = vmatprep.subr.bf16.mxu0 0
    %217 = vmatpush1.bf16.msra.mxu0 0
    %218 = vmatprep.subr.bf16.mxu0 0
    %219 = vmatpush1.bf16.msra.mxu0 0
    %220 = vmatprep.subr.bf16.mxu0 0
    %221 = vmatpush1.bf16.msra.mxu0 0
    %222 = vmatprep.subr.bf16.mxu0 0
    %223 = vmatpush1.bf16.msra.mxu0 0
    %224 = vmatprep.subr.bf16.mxu0 0
    %225 = vmatpush1.bf16.msra.mxu0 0
    %226 = vmatprep.subr.bf16.mxu0 0
    %227 = vmatpush1.bf16.msra.mxu0 0
    %228 = vmatprep.subr.bf16.mxu0 0
    %229 = vmatpush1.bf16.msra.mxu0 0
    %230 = vmatprep.subr.bf16.mxu0 0
    %231 = vmatpush1.bf16.msra.mxu0 0
    %232 = vmatprep.subr.bf16.mxu0 0
    %233 = vmatpush1.bf16.msra.mxu0 0
    %234 = vmatprep.subr.bf16.mxu0 0
    %235 = vmatpush1.bf16.msra.mxu0 0
    %236 = vmatprep.subr.bf16.mxu0 0
    %237 = vmatpush1.bf16.msra.mxu0 0
    %238 = vmatprep.mubr.bf16.mxu0 0
    %239 = vmatmul.mubr.bf16.gmra.mrb[0].mxu0 %v204
    %v240 = vpop.f32.mrb[0].mxu0
    %v241 = vadd.f32 %v184, %v240
    %v242 = vpop.f32.mrb[0].mxu0
    %v243 = vpop.f32.mrb[0].mxu0
    %v244 = vadd.f32 %v184, %v243
    %v245 = vpop.f32.mrb[0].mxu0
    %246 = vdwg.mxu0
    %v247 = vld [vmem:[#allocation11] sm:$0xf]
    %v248 = vld [vmem:[#allocation11 + $0x4] sm:$0xf]
    %s249 = scalar_lea.vmem [#allocation12], 32
    %v250 = vld [vmem:[%s249] sm:$0xf]
    %v251 = vld [vmem:[%s249 + $0x4] sm:$0xf]
    %v252 = vld [vmem:[%s249 + $0x8] sm:$0xf]
    %v253 = vld [vmem:[%s249 + $0xc] sm:$0xf]
    %s254 = scalar_lea.vmem [#allocation14], 2
    %v255 = vld [vmem:[%s254] sm:$0x1]
    %v257 = vlaneseq
    %v258 = vshrl.u32 %v257, 7
    %v259 = vsub.s32 0, %v258
    %v260 = vrot.slane %v255, %v259
    %v264 = vunpack.c.l.b16 %v247
    %v265 = vunpack.c.l.b16 %v248
    %v266 = vpack.c.b16 %v265, %v264
    %v271 = vunpack.c.l.b16 %v250
    %v272 = vunpack.c.l.b16 %v251
    %v273 = vunpack.c.l.b16 %v252
    %v274 = vunpack.c.l.b16 %v253
    %v275 = vpack.c.b16 %v272, %v271
    %v276 = vpack.c.b16 %v274, %v273
    %v280 = vsel %vm126, %v266, 0
    %282 = vmatprep.subr.bf16.mxu0 0
    %283 = vmatpush1.bf16.msra.mxu0 %v275
    %284 = vmatprep.subr.bf16.mxu0 0
    %285 = vmatpush1.bf16.msra.mxu0 %v276
    %286 = vmatprep.subr.bf16.mxu0 0
    %287 = vmatpush1.bf16.msra.mxu0 0
    %288 = vmatprep.subr.bf16.mxu0 0
    %289 = vmatpush1.bf16.msra.mxu0 0
    %290 = vmatprep.subr.bf16.mxu0 0
    %291 = vmatpush1.bf16.msra.mxu0 0
    %292 = vmatprep.subr.bf16.mxu0 0
    %293 = vmatpush1.bf16.msra.mxu0 0
    %294 = vmatprep.subr.bf16.mxu0 0
    %295 = vmatpush1.bf16.msra.mxu0 0
    %296 = vmatprep.subr.bf16.mxu0 0
    %297 = vmatpush1.bf16.msra.mxu0 0
    %298 = vmatprep.subr.bf16.mxu0 0
    %299 = vmatpush1.bf16.msra.mxu0 0
    %300 = vmatprep.subr.bf16.mxu0 0
    %301 = vmatpush1.bf16.msra.mxu0 0
    %302 = vmatprep.subr.bf16.mxu0 0
    %303 = vmatpush1.bf16.msra.mxu0 0
    %304 = vmatprep.subr.bf16.mxu0 0
    %305 = vmatpush1.bf16.msra.mxu0 0
    %306 = vmatprep.subr.bf16.mxu0 0
    %307 = vmatpush1.bf16.msra.mxu0 0
    %308 = vmatprep.subr.bf16.mxu0 0
    %309 = vmatpush1.bf16.msra.mxu0 0
    %310 = vmatprep.subr.bf16.mxu0 0
    %311 = vmatpush1.bf16.msra.mxu0 0
    %312 = vmatprep.subr.bf16.mxu0 0
    %313 = vmatpush1.bf16.msra.mxu0 0
    %314 = vmatprep.mubr.bf16.mxu0 0
    %315 = vmatmul.mubr.bf16.gmra.mrb[0].mxu0 %v280
    %v316 = vpop.f32.mrb[0].mxu0
    %v317 = vadd.f32 %v260, %v316
    %v318 = vpop.f32.mrb[0].mxu0
    %v319 = vpop.f32.mrb[0].mxu0
    %v320 = vadd.f32 %v260, %v319
    %v321 = vpop.f32.mrb[0].mxu0
    %322 = vdwg.mxu0
    %323 = vst.msk [vmem:[#allocation2] sm:$0xff] %vm126, %v165
    %324 = vst.msk [vmem:[#allocation2 + $0x8] sm:$0xff] %vm126, %v168
    %325 = vst.msk [vmem:[#allocation3] sm:$0xff] %vm126, %v241
    %326 = vst.msk [vmem:[#allocation3 + $0x8] sm:$0xff] %vm126, %v244
    %327 = vst.msk [vmem:[#allocation4] sm:$0xff] %vm126, %v317
    %328 = vst.msk [vmem:[#allocation4 + $0x8] sm:$0xff] %vm126, %v320
    %v329 = vld [vmem:[#allocation2] sm:$0xff]
    %v330 = vld [vmem:[#allocation2 + $0x8] sm:$0xff]
    %v331 = vld [vmem:[#allocation3] sm:$0xff]
    %v332 = vld [vmem:[#allocation3 + $0x8] sm:$0xff]
    %v333 = vld [vmem:[#allocation4] sm:$0xff]
    %v334 = vld [vmem:[#allocation4 + $0x8] sm:$0xff]
    %vm335 = vcmask 64512
    %v337 = vsel %vm335, %v329, 0
    %v340 = vsel %vm335, %v331, 0
    %342 = vmatprep.subr.mxu0 0.0
    %343 = vmatpush1.xpose.msra.mxu0 %v340
    %344 = vmatprep.subr.mxu0 0.0
    %345 = vmatpush1.xpose.msra.mxu0 0.0
    %346 = vmatprep.subr.mxu0 0.0
    %347 = vmatpush1.xpose.msra.mxu0 0.0
    %348 = vmatprep.subr.mxu0 0.0
    %349 = vmatpush1.xpose.msra.mxu0 0.0
    %350 = vmatprep.subr.mxu0 0.0
    %351 = vmatpush1.xpose.msra.mxu0 0.0
    %352 = vmatprep.subr.mxu0 0.0
    %353 = vmatpush1.xpose.msra.mxu0 0.0
    %354 = vmatprep.subr.mxu0 0.0
    %355 = vmatpush1.xpose.msra.mxu0 0.0
    %356 = vmatprep.subr.mxu0 0.0
    %357 = vmatpush1.xpose.msra.mxu0 0.0
    %358 = vmatprep.subr.mxu0 0.0
    %359 = vmatpush1.xpose.msra.mxu0 0.0
    %360 = vmatprep.subr.mxu0 0.0
    %361 = vmatpush1.xpose.msra.mxu0 0.0
    %362 = vmatprep.subr.mxu0 0.0
    %363 = vmatpush1.xpose.msra.mxu0 0.0
    %364 = vmatprep.subr.mxu0 0.0
    %365 = vmatpush1.xpose.msra.mxu0 0.0
    %366 = vmatprep.subr.mxu0 0.0
    %367 = vmatpush1.xpose.msra.mxu0 0.0
    %368 = vmatprep.subr.mxu0 0.0
    %369 = vmatpush1.xpose.msra.mxu0 0.0
    %370 = vmatprep.subr.mxu0 0.0
    %371 = vmatpush1.xpose.msra.mxu0 0.0
    %372 = vmatprep.subr.mxu0 0.0
    %373 = vmatpush1.xpose.msra.mxu0 0.0
    %374 = vmatprep.subr.mxu0 0.0
    %375 = vmatpush1.xpose.msra.mxu0 0.0
    %376 = vmatprep.subr.mxu0 0.0
    %377 = vmatpush1.xpose.msra.mxu0 0.0
    %378 = vmatprep.subr.mxu0 0.0
    %379 = vmatpush1.xpose.msra.mxu0 0.0
    %380 = vmatprep.subr.mxu0 0.0
    %381 = vmatpush1.xpose.msra.mxu0 0.0
    %382 = vmatprep.subr.mxu0 0.0
    %383 = vmatpush1.xpose.msra.mxu0 0.0
    %384 = vmatprep.subr.mxu0 0.0
    %385 = vmatpush1.xpose.msra.mxu0 0.0
    %386 = vmatprep.subr.mxu0 0.0
    %387 = vmatpush1.xpose.msra.mxu0 0.0
    %388 = vmatprep.subr.mxu0 0.0
    %389 = vmatpush1.xpose.msra.mxu0 0.0
    %390 = vmatprep.subr.mxu0 0.0
    %391 = vmatpush1.xpose.msra.mxu0 0.0
    %392 = vmatprep.subr.mxu0 0.0
    %393 = vmatpush1.xpose.msra.mxu0 0.0
    %394 = vmatprep.subr.mxu0 0.0
    %395 = vmatpush1.xpose.msra.mxu0 0.0
    %396 = vmatprep.subr.mxu0 0.0
    %397 = vmatpush1.xpose.msra.mxu0 0.0
    %398 = vmatprep.subr.mxu0 0.0
    %399 = vmatpush1.xpose.msra.mxu0 0.0
    %400 = vmatprep.subr.mxu0 0.0
    %401 = vmatpush1.xpose.msra.mxu0 0.0
    %402 = vmatprep.subr.mxu0 0.0
    %403 = vmatpush1.xpose.msra.mxu0 0.0
    %404 = vmatprep.subr.mxu0 0.0
    %405 = vmatpush1.xpose.msra.mxu0 0.0
    %406 = vmatprep.mubr.f32.mxu0 0.0
    %407 = vmatmul.mubr.f32.gmra.mrb[0].mxu0 %v337
    %v408 = vpop.f32.mrb[0].mxu0
    %v409 = vadd.f32 0.0, %v408
    %v410 = vpop.f32.mrb[0].mxu0
    %411 = vdwg.mxu0
    %v413 = vsel %vm335, %v330, 0
    %v416 = vsel %vm335, %v332, 0
    %418 = vmatprep.subr.mxu0 0.0
    %419 = vmatpush1.xpose.msra.mxu0 %v416
    %420 = vmatprep.subr.mxu0 0.0
    %421 = vmatpush1.xpose.msra.mxu0 0.0
    %422 = vmatprep.subr.mxu0 0.0
    %423 = vmatpush1.xpose.msra.mxu0 0.0
    %424 = vmatprep.subr.mxu0 0.0
    %425 = vmatpush1.xpose.msra.mxu0 0.0
    %426 = vmatprep.subr.mxu0 0.0
    %427 = vmatpush1.xpose.msra.mxu0 0.0
    %428 = vmatprep.subr.mxu0 0.0
    %429 = vmatpush1.xpose.msra.mxu0 0.0
    %430 = vmatprep.subr.mxu0 0.0
    %431 = vmatpush1.xpose.msra.mxu0 0.0
    %432 = vmatprep.subr.mxu0 0.0
    %433 = vmatpush1.xpose.msra.mxu0 0.0
    %434 = vmatprep.subr.mxu0 0.0
    %435 = vmatpush1.xpose.msra.mxu0 0.0
    %436 = vmatprep.subr.mxu0 0.0
    %437 = vmatpush1.xpose.msra.mxu0 0.0
    %438 = vmatprep.subr.mxu0 0.0
    %439 = vmatpush1.xpose.msra.mxu0 0.0
    %440 = vmatprep.subr.mxu0 0.0
    %441 = vmatpush1.xpose.msra.mxu0 0.0
    %442 = vmatprep.subr.mxu0 0.0
    %443 = vmatpush1.xpose.msra.mxu0 0.0
    %444 = vmatprep.subr.mxu0 0.0
    %445 = vmatpush1.xpose.msra.mxu0 0.0
    %446 = vmatprep.subr.mxu0 0.0
    %447 = vmatpush1.xpose.msra.mxu0 0.0
    %448 = vmatprep.subr.mxu0 0.0
    %449 = vmatpush1.xpose.msra.mxu0 0.0
    %450 = vmatprep.subr.mxu0 0.0
    %451 = vmatpush1.xpose.msra.mxu0 0.0
    %452 = vmatprep.subr.mxu0 0.0
    %453 = vmatpush1.xpose.msra.mxu0 0.0
    %454 = vmatprep.subr.mxu0 0.0
    %455 = vmatpush1.xpose.msra.mxu0 0.0
    %456 = vmatprep.subr.mxu0 0.0
    %457 = vmatpush1.xpose.msra.mxu0 0.0
    %458 = vmatprep.subr.mxu0 0.0
    %459 = vmatpush1.xpose.msra.mxu0 0.0
    %460 = vmatprep.subr.mxu0 0.0
    %461 = vmatpush1.xpose.msra.mxu0 0.0
    %462 = vmatprep.subr.mxu0 0.0
    %463 = vmatpush1.xpose.msra.mxu0 0.0
    %464 = vmatprep.subr.mxu0 0.0
    %465 = vmatpush1.xpose.msra.mxu0 0.0
    %466 = vmatprep.subr.mxu0 0.0
    %467 = vmatpush1.xpose.msra.mxu0 0.0
    %468 = vmatprep.subr.mxu0 0.0
    %469 = vmatpush1.xpose.msra.mxu0 0.0
    %470 = vmatprep.subr.mxu0 0.0
    %471 = vmatpush1.xpose.msra.mxu0 0.0
    %472 = vmatprep.subr.mxu0 0.0
    %473 = vmatpush1.xpose.msra.mxu0 0.0
    %474 = vmatprep.subr.mxu0 0.0
    %475 = vmatpush1.xpose.msra.mxu0 0.0
    %476 = vmatprep.subr.mxu0 0.0
    %477 = vmatpush1.xpose.msra.mxu0 0.0
    %478 = vmatprep.subr.mxu0 0.0
    %479 = vmatpush1.xpose.msra.mxu0 0.0
    %480 = vmatprep.subr.mxu0 0.0
    %481 = vmatpush1.xpose.msra.mxu0 0.0
    %482 = vmatprep.mubr.f32.mxu0 0.0
    %483 = vmatmul.mubr.f32.gmra.mrb[0].mxu0 %v413
    %v484 = vpop.f32.mrb[0].mxu0
    %v485 = vadd.f32 0.0, %v484
    %v486 = vpop.f32.mrb[0].mxu0
    %487 = vdwg.mxu0
    %v488 = vsel %vm335, %v409, -inf
    %489 = vmax.xlane.f32.xlu0 %v488
    %v490 = vpop.xlane.xlu0 %489
    %v491 = vsel %vm335, %v485, -inf
    %492 = vmax.xlane.f32.xlu0 %v491
    %v493 = vpop.xlane.xlu0 %492
    %v494 = vsub.f32 %v409, %v490
    %v495 = vsub.f32 %v485, %v493
    %v496 = vmul.f32 %v494, 1.442695
    %v497 = vpow.pop %v496
    %v498 = vmul.f32 %v495, 1.442695
    %v499 = vpow.pop %v498
    %v500 = vsel %vm335, %v497, 0.0
    %501 = vadd.xlane.f32.xlu0 %v500
    %v502 = vpop.xlane.xlu0 %501
    %v503 = vsel %vm335, %v499, 0.0
    %504 = vadd.xlane.f32.xlu0 %v503
    %v505 = vpop.xlane.xlu0 %504
    %v506 = vrcp.pop %v502
    %v507 = vrcp.pop %v505
    %v508 = vmul.f32 %v497, %v506
    %v509 = vmul.f32 %v499, %v507
    %v511 = vsel %vm335, %v508, 0
    %513 = vmatprep.subr.mxu0 0.0
    %514 = vmatpush1.msra.mxu0 %v333
    %515 = vmatprep.subr.mxu0 0.0
    %516 = vmatpush1.msra.mxu0 0.0
    %517 = vmatprep.subr.mxu0 0.0
    %518 = vmatpush1.msra.mxu0 0.0
    %519 = vmatprep.subr.mxu0 0.0
    %520 = vmatpush1.msra.mxu0 0.0
    %521 = vmatprep.subr.mxu0 0.0
    %522 = vmatpush1.msra.mxu0 0.0
    %523 = vmatprep.subr.mxu0 0.0
    %524 = vmatpush1.msra.mxu0 0.0
    %525 = vmatprep.subr.mxu0 0.0
    %526 = vmatpush1.msra.mxu0 0.0
    %527 = vmatprep.subr.mxu0 0.0
    %528 = vmatpush1.msra.mxu0 0.0
    %529 = vmatprep.subr.mxu0 0.0
    %530 = vmatpush1.msra.mxu0 0.0
    %531 = vmatprep.subr.mxu0 0.0
    %532 = vmatpush1.msra.mxu0 0.0
    %533 = vmatprep.subr.mxu0 0.0
    %534 = vmatpush1.msra.mxu0 0.0
    %535 = vmatprep.subr.mxu0 0.0
    %536 = vmatpush1.msra.mxu0 0.0
    %537 = vmatprep.subr.mxu0 0.0
    %538 = vmatpush1.msra.mxu0 0.0
    %539 = vmatprep.subr.mxu0 0.0
    %540 = vmatpush1.msra.mxu0 0.0
    %541 = vmatprep.subr.mxu0 0.0
    %542 = vmatpush1.msra.mxu0 0.0
    %543 = vmatprep.subr.mxu0 0.0
    %544 = vmatpush1.msra.mxu0 0.0
    %545 = vmatprep.subr.mxu0 0.0
    %546 = vmatpush1.msra.mxu0 0.0
    %547 = vmatprep.subr.mxu0 0.0
    %548 = vmatpush1.msra.mxu0 0.0
    %549 = vmatprep.subr.mxu0 0.0
    %550 = vmatpush1.msra.mxu0 0.0
    %551 = vmatprep.subr.mxu0 0.0
    %552 = vmatpush1.msra.mxu0 0.0
    %553 = vmatprep.subr.mxu0 0.0
    %554 = vmatpush1.msra.mxu0 0.0
    %555 = vmatprep.subr.mxu0 0.0
    %556 = vmatpush1.msra.mxu0 0.0
    %557 = vmatprep.subr.mxu0 0.0
    %558 = vmatpush1.msra.mxu0 0.0
    %559 = vmatprep.subr.mxu0 0.0
    %560 = vmatpush1.msra.mxu0 0.0
    %561 = vmatprep.subr.mxu0 0.0
    %562 = vmatpush1.msra.mxu0 0.0
    %563 = vmatprep.subr.mxu0 0.0
    %564 = vmatpush1.msra.mxu0 0.0
    %565 = vmatprep.subr.mxu0 0.0
    %566 = vmatpush1.msra.mxu0 0.0
    %567 = vmatprep.subr.mxu0 0.0
    %568 = vmatpush1.msra.mxu0 0.0
    %569 = vmatprep.subr.mxu0 0.0
    %570 = vmatpush1.msra.mxu0 0.0
    %571 = vmatprep.subr.mxu0 0.0
    %572 = vmatpush1.msra.mxu0 0.0
    %573 = vmatprep.subr.mxu0 0.0
    %574 = vmatpush1.msra.mxu0 0.0
    %575 = vmatprep.subr.mxu0 0.0
    %576 = vmatpush1.msra.mxu0 0.0
    %577 = vmatprep.mubr.f32.mxu0 0.0
    %578 = vmatmul.mubr.f32.gmra.mrb[0].mxu0 %v511
    %v579 = vpop.f32.mrb[0].mxu0
    %v580 = vadd.f32 0.0, %v579
    %v581 = vpop.f32.mrb[0].mxu0
    %582 = vdwg.mxu0
    %v584 = vsel %vm335, %v509, 0
    %586 = vmatprep.subr.mxu0 0.0
    %587 = vmatpush1.msra.mxu0 %v334
    %588 = vmatprep.subr.mxu0 0.0
    %589 = vmatpush1.msra.mxu0 0.0
    %590 = vmatprep.subr.mxu0 0.0
    %591 = vmatpush1.msra.mxu0 0.0
    %592 = vmatprep.subr.mxu0 0.0
    %593 = vmatpush1.msra.mxu0 0.0
    %594 = vmatprep.subr.mxu0 0.0
    %595 = vmatpush1.msra.mxu0 0.0
    %596 = vmatprep.subr.mxu0 0.0
    %597 = vmatpush1.msra.mxu0 0.0
    %598 = vmatprep.subr.mxu0 0.0
    %599 = vmatpush1.msra.mxu0 0.0
    %600 = vmatprep.subr.mxu0 0.0
    %601 = vmatpush1.msra.mxu0 0.0
    %602 = vmatprep.subr.mxu0 0.0
    %603 = vmatpush1.msra.mxu0 0.0
    %604 = vmatprep.subr.mxu0 0.0
    %605 = vmatpush1.msra.mxu0 0.0
    %606 = vmatprep.subr.mxu0 0.0
    %607 = vmatpush1.msra.mxu0 0.0
    %608 = vmatprep.subr.mxu0 0.0
    %609 = vmatpush1.msra.mxu0 0.0
    %610 = vmatprep.subr.mxu0 0.0
    %611 = vmatpush1.msra.mxu0 0.0
    %612 = vmatprep.subr.mxu0 0.0
    %613 = vmatpush1.msra.mxu0 0.0
    %614 = vmatprep.subr.mxu0 0.0
    %615 = vmatpush1.msra.mxu0 0.0
    %616 = vmatprep.subr.mxu0 0.0
    %617 = vmatpush1.msra.mxu0 0.0
    %618 = vmatprep.subr.mxu0 0.0
    %619 = vmatpush1.msra.mxu0 0.0
    %620 = vmatprep.subr.mxu0 0.0
    %621 = vmatpush1.msra.mxu0 0.0
    %622 = vmatprep.subr.mxu0 0.0
    %623 = vmatpush1.msra.mxu0 0.0
    %624 = vmatprep.subr.mxu0 0.0
    %625 = vmatpush1.msra.mxu0 0.0
    %626 = vmatprep.subr.mxu0 0.0
    %627 = vmatpush1.msra.mxu0 0.0
    %628 = vmatprep.subr.mxu0 0.0
    %629 = vmatpush1.msra.mxu0 0.0
    %630 = vmatprep.subr.mxu0 0.0
    %631 = vmatpush1.msra.mxu0 0.0
    %632 = vmatprep.subr.mxu0 0.0
    %633 = vmatpush1.msra.mxu0 0.0
    %634 = vmatprep.subr.mxu0 0.0
    %635 = vmatpush1.msra.mxu0 0.0
    %636 = vmatprep.subr.mxu0 0.0
    %637 = vmatpush1.msra.mxu0 0.0
    %638 = vmatprep.subr.mxu0 0.0
    %639 = vmatpush1.msra.mxu0 0.0
    %640 = vmatprep.subr.mxu0 0.0
    %641 = vmatpush1.msra.mxu0 0.0
    %642 = vmatprep.subr.mxu0 0.0
    %643 = vmatpush1.msra.mxu0 0.0
    %644 = vmatprep.subr.mxu0 0.0
    %645 = vmatpush1.msra.mxu0 0.0
    %646 = vmatprep.subr.mxu0 0.0
    %647 = vmatpush1.msra.mxu0 0.0
    %648 = vmatprep.subr.mxu0 0.0
    %649 = vmatpush1.msra.mxu0 0.0
    %650 = vmatprep.mubr.f32.mxu0 0.0
    %651 = vmatmul.mubr.f32.gmra.mrb[0].mxu0 %v584
    %v652 = vpop.f32.mrb[0].mxu0
    %v653 = vadd.f32 0.0, %v652
    %v654 = vpop.f32.mrb[0].mxu0
    %655 = vdwg.mxu0
    %v656 = vpack.c.bf16 %v653, %v580
    %657 = vst.msk [vmem:[#allocation5] sm:$0xff] %vm335, %v656
    %v658 = vld [vmem:[#allocation2] sm:$0xff]
    %v659 = vld [vmem:[#allocation2 + $0x8] sm:$0xff]
    %v660 = vld [vmem:[#allocation3] sm:$0xff]
    %v661 = vld [vmem:[#allocation3 + $0x8] sm:$0xff]
    %v662 = vld [vmem:[#allocation4] sm:$0xff]
    %v663 = vld [vmem:[#allocation4 + $0x8] sm:$0xff]
    %665 = vrot.lane.b32.xlu0 %v658, 120
    %v666 = vpop.permute.xlu0 %665
    %668 = vrot.lane.b32.xlu0 %v660, 120
    %v669 = vpop.permute.xlu0 %668
    %v670 = vsel %vm335, %v666, 0
    %v672 = vsel %vm335, %v669, 0
    %674 = vmatprep.subr.mxu0 0.0
    %675 = vmatpush1.xpose.msra.mxu0 %v672
    %676 = vmatprep.subr.mxu0 0.0
    %677 = vmatpush1.xpose.msra.mxu0 0.0
    %678 = vmatprep.subr.mxu0 0.0
    %679 = vmatpush1.xpose.msra.mxu0 0.0
    %680 = vmatprep.subr.mxu0 0.0
    %681 = vmatpush1.xpose.msra.mxu0 0.0
    %682 = vmatprep.subr.mxu0 0.0
    %683 = vmatpush1.xpose.msra.mxu0 0.0
    %684 = vmatprep.subr.mxu0 0.0
    %685 = vmatpush1.xpose.msra.mxu0 0.0
    %686 = vmatprep.subr.mxu0 0.0
    %687 = vmatpush1.xpose.msra.mxu0 0.0
    %688 = vmatprep.subr.mxu0 0.0
    %689 = vmatpush1.xpose.msra.mxu0 0.0
    %690 = vmatprep.subr.mxu0 0.0
    %691 = vmatpush1.xpose.msra.mxu0 0.0
    %692 = vmatprep.subr.mxu0 0.0
    %693 = vmatpush1.xpose.msra.mxu0 0.0
    %694 = vmatprep.subr.mxu0 0.0
    %695 = vmatpush1.xpose.msra.mxu0 0.0
    %696 = vmatprep.subr.mxu0 0.0
    %697 = vmatpush1.xpose.msra.mxu0 0.0
    %698 = vmatprep.subr.mxu0 0.0
    %699 = vmatpush1.xpose.msra.mxu0 0.0
    %700 = vmatprep.subr.mxu0 0.0
    %701 = vmatpush1.xpose.msra.mxu0 0.0
    %702 = vmatprep.subr.mxu0 0.0
    %703 = vmatpush1.xpose.msra.mxu0 0.0
    %704 = vmatprep.subr.mxu0 0.0
    %705 = vmatpush1.xpose.msra.mxu0 0.0
    %706 = vmatprep.subr.mxu0 0.0
    %707 = vmatpush1.xpose.msra.mxu0 0.0
    %708 = vmatprep.subr.mxu0 0.0
    %709 = vmatpush1.xpose.msra.mxu0 0.0
    %710 = vmatprep.subr.mxu0 0.0
    %711 = vmatpush1.xpose.msra.mxu0 0.0
    %712 = vmatprep.subr.mxu0 0.0
    %713 = vmatpush1.xpose.msra.mxu0 0.0
    %714 = vmatprep.subr.mxu0 0.0
    %715 = vmatpush1.xpose.msra.mxu0 0.0
    %716 = vmatprep.subr.mxu0 0.0
    %717 = vmatpush1.xpose.msra.mxu0 0.0
    %718 = vmatprep.subr.mxu0 0.0
    %719 = vmatpush1.xpose.msra.mxu0 0.0
    %720 = vmatprep.subr.mxu0 0.0
    %721 = vmatpush1.xpose.msra.mxu0 0.0
    %722 = vmatprep.subr.mxu0 0.0
    %723 = vmatpush1.xpose.msra.mxu0 0.0
    %724 = vmatprep.subr.mxu0 0.0
    %725 = vmatpush1.xpose.msra.mxu0 0.0
    %726 = vmatprep.subr.mxu0 0.0
    %727 = vmatpush1.xpose.msra.mxu0 0.0
    %728 = vmatprep.subr.mxu0 0.0
    %729 = vmatpush1.xpose.msra.mxu0 0.0
    %730 = vmatprep.subr.mxu0 0.0
    %731 = vmatpush1.xpose.msra.mxu0 0.0
    %732 = vmatprep.subr.mxu0 0.0
    %733 = vmatpush1.xpose.msra.mxu0 0.0
    %734 = vmatprep.subr.mxu0 0.0
    %735 = vmatpush1.xpose.msra.mxu0 0.0
    %736 = vmatprep.subr.mxu0 0.0
    %737 = vmatpush1.xpose.msra.mxu0 0.0
    %738 = vmatprep.mubr.f32.mxu0 0.0
    %739 = vmatmul.mubr.f32.gmra.mrb[0].mxu0 %v670
    %v740 = vpop.f32.mrb[0].mxu0
    %v741 = vadd.f32 0.0, %v740
    %v742 = vpop.f32.mrb[0].mxu0
    %743 = vdwg.mxu0
    %745 = vrot.lane.b32.xlu0 %v659, 120
    %v746 = vpop.permute.xlu0 %745
    %748 = vrot.lane.b32.xlu0 %v661, 120
    %v749 = vpop.permute.xlu0 %748
    %v750 = vsel %vm335, %v746, 0
    %v752 = vsel %vm335, %v749, 0
    %754 = vmatprep.subr.mxu0 0.0
    %755 = vmatpush1.xpose.msra.mxu0 %v752
    %756 = vmatprep.subr.mxu0 0.0
    %757 = vmatpush1.xpose.msra.mxu0 0.0
    %758 = vmatprep.subr.mxu0 0.0
    %759 = vmatpush1.xpose.msra.mxu0 0.0
    %760 = vmatprep.subr.mxu0 0.0
    %761 = vmatpush1.xpose.msra.mxu0 0.0
    %762 = vmatprep.subr.mxu0 0.0
    %763 = vmatpush1.xpose.msra.mxu0 0.0
    %764 = vmatprep.subr.mxu0 0.0
    %765 = vmatpush1.xpose.msra.mxu0 0.0
    %766 = vmatprep.subr.mxu0 0.0
    %767 = vmatpush1.xpose.msra.mxu0 0.0
    %768 = vmatprep.subr.mxu0 0.0
    %769 = vmatpush1.xpose.msra.mxu0 0.0
    %770 = vmatprep.subr.mxu0 0.0
    %771 = vmatpush1.xpose.msra.mxu0 0.0
    %772 = vmatprep.subr.mxu0 0.0
    %773 = vmatpush1.xpose.msra.mxu0 0.0
    %774 = vmatprep.subr.mxu0 0.0
    %775 = vmatpush1.xpose.msra.mxu0 0.0
    %776 = vmatprep.subr.mxu0 0.0
    %777 = vmatpush1.xpose.msra.mxu0 0.0
    %778 = vmatprep.subr.mxu0 0.0
    %779 = vmatpush1.xpose.msra.mxu0 0.0
    %780 = vmatprep.subr.mxu0 0.0
    %781 = vmatpush1.xpose.msra.mxu0 0.0
    %782 = vmatprep.subr.mxu0 0.0
    %783 = vmatpush1.xpose.msra.mxu0 0.0
    %784 = vmatprep.subr.mxu0 0.0
    %785 = vmatpush1.xpose.msra.mxu0 0.0
    %786 = vmatprep.subr.mxu0 0.0
    %787 = vmatpush1.xpose.msra.mxu0 0.0
    %788 = vmatprep.subr.mxu0 0.0
    %789 = vmatpush1.xpose.msra.mxu0 0.0
    %790 = vmatprep.subr.mxu0 0.0
    %791 = vmatpush1.xpose.msra.mxu0 0.0
    %792 = vmatprep.subr.mxu0 0.0
    %793 = vmatpush1.xpose.msra.mxu0 0.0
    %794 = vmatprep.subr.mxu0 0.0
    %795 = vmatpush1.xpose.msra.mxu0 0.0
    %796 = vmatprep.subr.mxu0 0.0
    %797 = vmatpush1.xpose.msra.mxu0 0.0
    %798 = vmatprep.subr.mxu0 0.0
    %799 = vmatpush1.xpose.msra.mxu0 0.0
    %800 = vmatprep.subr.mxu0 0.0
    %801 = vmatpush1.xpose.msra.mxu0 0.0
    %802 = vmatprep.subr.mxu0 0.0
    %803 = vmatpush1.xpose.msra.mxu0 0.0
    %804 = vmatprep.subr.mxu0 0.0
    %805 = vmatpush1.xpose.msra.mxu0 0.0
    %806 = vmatprep.subr.mxu0 0.0
    %807 = vmatpush1.xpose.msra.mxu0 0.0
    %808 = vmatprep.subr.mxu0 0.0
    %809 = vmatpush1.xpose.msra.mxu0 0.0
    %810 = vmatprep.subr.mxu0 0.0
    %811 = vmatpush1.xpose.msra.mxu0 0.0
    %812 = vmatprep.subr.mxu0 0.0
    %813 = vmatpush1.xpose.msra.mxu0 0.0
    %814 = vmatprep.subr.mxu0 0.0
    %815 = vmatpush1.xpose.msra.mxu0 0.0
    %816 = vmatprep.subr.mxu0 0.0
    %817 = vmatpush1.xpose.msra.mxu0 0.0
    %818 = vmatprep.mubr.f32.mxu0 0.0
    %819 = vmatmul.mubr.f32.gmra.mrb[0].mxu0 %v750
    %v820 = vpop.f32.mrb[0].mxu0
    %v821 = vadd.f32 0.0, %v820
    %v822 = vpop.f32.mrb[0].mxu0
    %823 = vdwg.mxu0
    %v824 = vsel %vm335, %v741, -inf
    %825 = vmax.xlane.f32.xlu0 %v824
    %v826 = vpop.xlane.xlu0 %825
    %v827 = vsel %vm335, %v821, -inf
    %828 = vmax.xlane.f32.xlu0 %v827
    %v829 = vpop.xlane.xlu0 %828
    %v830 = vsub.f32 %v741, %v826
    %v831 = vsub.f32 %v821, %v829
    %v832 = vmul.f32 %v830, 1.442695
    %v833 = vpow.pop %v832
    %v834 = vmul.f32 %v831, 1.442695
    %v835 = vpow.pop %v834
    %v836 = vsel %vm335, %v833, 0.0
    %837 = vadd.xlane.f32.xlu0 %v836
    %v838 = vpop.xlane.xlu0 %837
    %v839 = vsel %vm335, %v835, 0.0
    %840 = vadd.xlane.f32.xlu0 %v839
    %v841 = vpop.xlane.xlu0 %840
    %v842 = vrcp.pop %v838
    %v843 = vrcp.pop %v841
    %v844 = vmul.f32 %v833, %v842
    %v845 = vmul.f32 %v835, %v843
    %847 = vrot.lane.b32.xlu0 %v662, 120
    %v848 = vpop.permute.xlu0 %847
    %v851 = vsel %vm335, %v844, 0
    %853 = vmatprep.subr.mxu0 0.0
    %854 = vmatpush1.msra.mxu0 %v848
    %855 = vmatprep.subr.mxu0 0.0
    %856 = vmatpush1.msra.mxu0 0.0
    %857 = vmatprep.subr.mxu0 0.0
    %858 = vmatpush1.msra.mxu0 0.0
    %859 = vmatprep.subr.mxu0 0.0
    %860 = vmatpush1.msra.mxu0 0.0
    %861 = vmatprep.subr.mxu0 0.0
    %862 = vmatpush1.msra.mxu0 0.0
    %863 = vmatprep.subr.mxu0 0.0
    %864 = vmatpush1.msra.mxu0 0.0
    %865 = vmatprep.subr.mxu0 0.0
    %866 = vmatpush1.msra.mxu0 0.0
    %867 = vmatprep.subr.mxu0 0.0
    %868 = vmatpush1.msra.mxu0 0.0
    %869 = vmatprep.subr.mxu0 0.0
    %870 = vmatpush1.msra.mxu0 0.0
    %871 = vmatprep.subr.mxu0 0.0
    %872 = vmatpush1.msra.mxu0 0.0
    %873 = vmatprep.subr.mxu0 0.0
    %874 = vmatpush1.msra.mxu0 0.0
    %875 = vmatprep.subr.mxu0 0.0
    %876 = vmatpush1.msra.mxu0 0.0
    %877 = vmatprep.subr.mxu0 0.0
    %878 = vmatpush1.msra.mxu0 0.0
    %879 = vmatprep.subr.mxu0 0.0
    %880 = vmatpush1.msra.mxu0 0.0
    %881 = vmatprep.subr.mxu0 0.0
    %882 = vmatpush1.msra.mxu0 0.0
    %883 = vmatprep.subr.mxu0 0.0
    %884 = vmatpush1.msra.mxu0 0.0
    %885 = vmatprep.subr.mxu0 0.0
    %886 = vmatpush1.msra.mxu0 0.0
    %887 = vmatprep.subr.mxu0 0.0
    %888 = vmatpush1.msra.mxu0 0.0
    %889 = vmatprep.subr.mxu0 0.0
    %890 = vmatpush1.msra.mxu0 0.0
    %891 = vmatprep.subr.mxu0 0.0
    %892 = vmatpush1.msra.mxu0 0.0
    %893 = vmatprep.subr.mxu0 0.0
    %894 = vmatpush1.msra.mxu0 0.0
    %895 = vmatprep.subr.mxu0 0.0
    %896 = vmatpush1.msra.mxu0 0.0
    %897 = vmatprep.subr.mxu0 0.0
    %898 = vmatpush1.msra.mxu0 0.0
    %899 = vmatprep.subr.mxu0 0.0
    %900 = vmatpush1.msra.mxu0 0.0
    %901 = vmatprep.subr.mxu0 0.0
    %902 = vmatpush1.msra.mxu0 0.0
    %903 = vmatprep.subr.mxu0 0.0
    %904 = vmatpush1.msra.mxu0 0.0
    %905 = vmatprep.subr.mxu0 0.0
    %906 = vmatpush1.msra.mxu0 0.0
    %907 = vmatprep.subr.mxu0 0.0
    %908 = vmatpush1.msra.mxu0 0.0
    %909 = vmatprep.subr.mxu0 0.0
    %910 = vmatpush1.msra.mxu0 0.0
    %911 = vmatprep.subr.mxu0 0.0
    %912 = vmatpush1.msra.mxu0 0.0
    %913 = vmatprep.subr.mxu0 0.0
    %914 = vmatpush1.msra.mxu0 0.0
    %915 = vmatprep.subr.mxu0 0.0
    %916 = vmatpush1.msra.mxu0 0.0
    %917 = vmatprep.mubr.f32.mxu0 0.0
    %918 = vmatmul.mubr.f32.gmra.mrb[0].mxu0 %v851
    %v919 = vpop.f32.mrb[0].mxu0
    %v920 = vadd.f32 0.0, %v919
    %v921 = vpop.f32.mrb[0].mxu0
    %922 = vdwg.mxu0
    %924 = vrot.lane.b32.xlu0 %v663, 120
    %v925 = vpop.permute.xlu0 %924
    %v928 = vsel %vm335, %v845, 0
    %930 = vmatprep.subr.mxu0 0.0
    %931 = vmatpush1.msra.mxu0 %v925
    %932 = vmatprep.subr.mxu0 0.0
    %933 = vmatpush1.msra.mxu0 0.0
    %934 = vmatprep.subr.mxu0 0.0
    %935 = vmatpush1.msra.mxu0 0.0
    %936 = vmatprep.subr.mxu0 0.0
    %937 = vmatpush1.msra.mxu0 0.0
    %938 = vmatprep.subr.mxu0 0.0
    %939 = vmatpush1.msra.mxu0 0.0
    %940 = vmatprep.subr.mxu0 0.0
    %941 = vmatpush1.msra.mxu0 0.0
    %942 = vmatprep.subr.mxu0 0.0
    %943 = vmatpush1.msra.mxu0 0.0
    %944 = vmatprep.subr.mxu0 0.0
    %945 = vmatpush1.msra.mxu0 0.0
    %946 = vmatprep.subr.mxu0 0.0
    %947 = vmatpush1.msra.mxu0 0.0
    %948 = vmatprep.subr.mxu0 0.0
    %949 = vmatpush1.msra.mxu0 0.0
    %950 = vmatprep.subr.mxu0 0.0
    %951 = vmatpush1.msra.mxu0 0.0
    %952 = vmatprep.subr.mxu0 0.0
    %953 = vmatpush1.msra.mxu0 0.0
    %954 = vmatprep.subr.mxu0 0.0
    %955 = vmatpush1.msra.mxu0 0.0
    %956 = vmatprep.subr.mxu0 0.0
    %957 = vmatpush1.msra.mxu0 0.0
    %958 = vmatprep.subr.mxu0 0.0
    %959 = vmatpush1.msra.mxu0 0.0
    %960 = vmatprep.subr.mxu0 0.0
    %961 = vmatpush1.msra.mxu0 0.0
    %962 = vmatprep.subr.mxu0 0.0
    %963 = vmatpush1.msra.mxu0 0.0
    %964 = vmatprep.subr.mxu0 0.0
    %965 = vmatpush1.msra.mxu0 0.0
    %966 = vmatprep.subr.mxu0 0.0
    %967 = vmatpush1.msra.mxu0 0.0
    %968 = vmatprep.subr.mxu0 0.0
    %969 = vmatpush1.msra.mxu0 0.0
    %970 = vmatprep.subr.mxu0 0.0
    %971 = vmatpush1.msra.mxu0 0.0
    %972 = vmatprep.subr.mxu0 0.0
    %973 = vmatpush1.msra.mxu0 0.0
    %974 = vmatprep.subr.mxu0 0.0
    %975 = vmatpush1.msra.mxu0 0.0
    %976 = vmatprep.subr.mxu0 0.0
    %977 = vmatpush1.msra.mxu0 0.0
    %978 = vmatprep.subr.mxu0 0.0
    %979 = vmatpush1.msra.mxu0 0.0
    %980 = vmatprep.subr.mxu0 0.0
    %981 = vmatpush1.msra.mxu0 0.0
    %982 = vmatprep.subr.mxu0 0.0
    %983 = vmatpush1.msra.mxu0 0.0
    %984 = vmatprep.subr.mxu0 0.0
    %985 = vmatpush1.msra.mxu0 0.0
    %986 = vmatprep.subr.mxu0 0.0
    %987 = vmatpush1.msra.mxu0 0.0
    %988 = vmatprep.subr.mxu0 0.0
    %989 = vmatpush1.msra.mxu0 0.0
    %990 = vmatprep.subr.mxu0 0.0
    %991 = vmatpush1.msra.mxu0 0.0
    %992 = vmatprep.subr.mxu0 0.0
    %993 = vmatpush1.msra.mxu0 0.0
    %994 = vmatprep.mubr.f32.mxu0 0.0
    %995 = vmatmul.mubr.f32.gmra.mrb[0].mxu0 %v928
    %v996 = vpop.f32.mrb[0].mxu0
    %v997 = vadd.f32 0.0, %v996
    %v998 = vpop.f32.mrb[0].mxu0
    %999 = vdwg.mxu0
    %v1000 = vpack.c.bf16 %v997, %v920
    %1002 = vrot.lane.b32.xlu0 %v1000, 8
    %v1003 = vpop.permute.xlu0 %1002
    %vm1005 = vcmask 130112
    %1006 = vst.msk [vmem:[#allocation5] sm:$0xff] %vm1005, %v1003
    %v1007 = vld [vmem:[#allocation2] sm:$0xff]
    %v1008 = vld [vmem:[#allocation2 + $0x8] sm:$0xff]
    %v1009 = vld [vmem:[#allocation3] sm:$0xff]
    %v1010 = vld [vmem:[#allocation3 + $0x8] sm:$0xff]
    %v1011 = vld [vmem:[#allocation4] sm:$0xff]
    %v1012 = vld [vmem:[#allocation4 + $0x8] sm:$0xff]
    %1014 = vrot.lane.b32.xlu0 %v1007, 112
    %v1015 = vpop.permute.xlu0 %1014
    %1017 = vrot.lane.b32.xlu0 %v1009, 112
    %v1018 = vpop.permute.xlu0 %1017
    %v1019 = vsel %vm335, %v1015, 0
    %v1021 = vsel %vm335, %v1018, 0
    %1023 = vmatprep.subr.mxu0 0.0
    %1024 = vmatpush1.xpose.msra.mxu0 %v1021
    %1025 = vmatprep.subr.mxu0 0.0
    %1026 = vmatpush1.xpose.msra.mxu0 0.0
    %1027 = vmatprep.subr.mxu0 0.0
    %1028 = vmatpush1.xpose.msra.mxu0 0.0
    %1029 = vmatprep.subr.mxu0 0.0
    %1030 = vmatpush1.xpose.msra.mxu0 0.0
    %1031 = vmatprep.subr.mxu0 0.0
    %1032 = vmatpush1.xpose.msra.mxu0 0.0
    %1033 = vmatprep.subr.mxu0 0.0
    %1034 = vmatpush1.xpose.msra.mxu0 0.0
    %1035 = vmatprep.subr.mxu0 0.0
    %1036 = vmatpush1.xpose.msra.mxu0 0.0
    %1037 = vmatprep.subr.mxu0 0.0
    %1038 = vmatpush1.xpose.msra.mxu0 0.0
    %1039 = vmatprep.subr.mxu0 0.0
    %1040 = vmatpush1.xpose.msra.mxu0 0.0
    %1041 = vmatprep.subr.mxu0 0.0
    %1042 = vmatpush1.xpose.msra.mxu0 0.0
    %1043 = vmatprep.subr.mxu0 0.0
    %1044 = vmatpush1.xpose.msra.mxu0 0.0
    %1045 = vmatprep.subr.mxu0 0.0
    %1046 = vmatpush1.xpose.msra.mxu0 0.0
    %1047 = vmatprep.subr.mxu0 0.0
    %1048 = vmatpush1.xpose.msra.mxu0 0.0
    %1049 = vmatprep.subr.mxu0 0.0
    %1050 = vmatpush1.xpose.msra.mxu0 0.0
    %1051 = vmatprep.subr.mxu0 0.0
    %1052 = vmatpush1.xpose.msra.mxu0 0.0
    %1053 = vmatprep.subr.mxu0 0.0
    %1054 = vmatpush1.xpose.msra.mxu0 0.0
    %1055 = vmatprep.subr.mxu0 0.0
    %1056 = vmatpush1.xpose.msra.mxu0 0.0
    %1057 = vmatprep.subr.mxu0 0.0
    %1058 = vmatpush1.xpose.msra.mxu0 0.0
    %1059 = vmatprep.subr.mxu0 0.0
    %1060 = vmatpush1.xpose.msra.mxu0 0.0
    %1061 = vmatprep.subr.mxu0 0.0
    %1062 = vmatpush1.xpose.msra.mxu0 0.0
    %1063 = vmatprep.subr.mxu0 0.0
    %1064 = vmatpush1.xpose.msra.mxu0 0.0
    %1065 = vmatprep.subr.mxu0 0.0
    %1066 = vmatpush1.xpose.msra.mxu0 0.0
    %1067 = vmatprep.subr.mxu0 0.0
    %1068 = vmatpush1.xpose.msra.mxu0 0.0
    %1069 = vmatprep.subr.mxu0 0.0
    %1070 = vmatpush1.xpose.msra.mxu0 0.0
    %1071 = vmatprep.subr.mxu0 0.0
    %1072 = vmatpush1.xpose.msra.mxu0 0.0
    %1073 = vmatprep.subr.mxu0 0.0
    %1074 = vmatpush1.xpose.msra.mxu0 0.0
    %1075 = vmatprep.subr.mxu0 0.0
    %1076 = vmatpush1.xpose.msra.mxu0 0.0
    %1077 = vmatprep.subr.mxu0 0.0
    %1078 = vmatpush1.xpose.msra.mxu0 0.0
    %1079 = vmatprep.subr.mxu0 0.0
    %1080 = vmatpush1.xpose.msra.mxu0 0.0
    %1081 = vmatprep.subr.mxu0 0.0
    %1082 = vmatpush1.xpose.msra.mxu0 0.0
    %1083 = vmatprep.subr.mxu0 0.0
    %1084 = vmatpush1.xpose.msra.mxu0 0.0
    %1085 = vmatprep.subr.mxu0 0.0
    %1086 = vmatpush1.xpose.msra.mxu0 0.0
    %1087 = vmatprep.mubr.f32.mxu0 0.0
    %1088 = vmatmul.mubr.f32.gmra.mrb[0].mxu0 %v1019
    %v1089 = vpop.f32.mrb[0].mxu0
    %v1090 = vadd.f32 0.0, %v1089
    %v1091 = vpop.f32.mrb[0].mxu0
    %1092 = vdwg.mxu0
    %1094 = vrot.lane.b32.xlu0 %v1008, 112
    %v1095 = vpop.permute.xlu0 %1094
    %1097 = vrot.lane.b32.xlu0 %v1010, 112
    %v1098 = vpop.permute.xlu0 %1097
    %v1099 = vsel %vm335, %v1095, 0
    %v1101 = vsel %vm335, %v1098, 0
    %1103 = vmatprep.subr.mxu0 0.0
    %1104 = vmatpush1.xpose.msra.mxu0 %v1101
    %1105 = vmatprep.subr.mxu0 0.0
    %1106 = vmatpush1.xpose.msra.mxu0 0.0
    %1107 = vmatprep.subr.mxu0 0.0
    %1108 = vmatpush1.xpose.msra.mxu0 0.0
    %1109 = vmatprep.subr.mxu0 0.0
    %1110 = vmatpush1.xpose.msra.mxu0 0.0
    %1111 = vmatprep.subr.mxu0 0.0
    %1112 = vmatpush1.xpose.msra.mxu0 0.0
    %1113 = vmatprep.subr.mxu0 0.0
    %1114 = vmatpush1.xpose.msra.mxu0 0.0
    %1115 = vmatprep.subr.mxu0 0.0
    %1116 = vmatpush1.xpose.msra.mxu0 0.0
    %1117 = vmatprep.subr.mxu0 0.0
    %1118 = vmatpush1.xpose.msra.mxu0 0.0
    %1119 = vmatprep.subr.mxu0 0.0
    %1120 = vmatpush1.xpose.msra.mxu0 0.0
    %1121 = vmatprep.subr.mxu0 0.0
    %1122 = vmatpush1.xpose.msra.mxu0 0.0
    %1123 = vmatprep.subr.mxu0 0.0
    %1124 = vmatpush1.xpose.msra.mxu0 0.0
    %1125 = vmatprep.subr.mxu0 0.0
    %1126 = vmatpush1.xpose.msra.mxu0 0.0
    %1127 = vmatprep.subr.mxu0 0.0
    %1128 = vmatpush1.xpose.msra.mxu0 0.0
    %1129 = vmatprep.subr.mxu0 0.0
    %1130 = vmatpush1.xpose.msra.mxu0 0.0
    %1131 = vmatprep.subr.mxu0 0.0
    %1132 = vmatpush1.xpose.msra.mxu0 0.0
    %1133 = vmatprep.subr.mxu0 0.0
    %1134 = vmatpush1.xpose.msra.mxu0 0.0
    %1135 = vmatprep.subr.mxu0 0.0
    %1136 = vmatpush1.xpose.msra.mxu0 0.0
    %1137 = vmatprep.subr.mxu0 0.0
    %1138 = vmatpush1.xpose.msra.mxu0 0.0
    %1139 = vmatprep.subr.mxu0 0.0
    %1140 = vmatpush1.xpose.msra.mxu0 0.0
    %1141 = vmatprep.subr.mxu0 0.0
    %1142 = vmatpush1.xpose.msra.mxu0 0.0
    %1143 = vmatprep.subr.mxu0 0.0
    %1144 = vmatpush1.xpose.msra.mxu0 0.0
    %1145 = vmatprep.subr.mxu0 0.0
    %1146 = vmatpush1.xpose.msra.mxu0 0.0
    %1147 = vmatprep.subr.mxu0 0.0
    %1148 = vmatpush1.xpose.msra.mxu0 0.0
    %1149 = vmatprep.subr.mxu0 0.0
    %1150 = vmatpush1.xpose.msra.mxu0 0.0
    %1151 = vmatprep.subr.mxu0 0.0
    %1152 = vmatpush1.xpose.msra.mxu0 0.0
    %1153 = vmatprep.subr.mxu0 0.0
    %1154 = vmatpush1.xpose.msra.mxu0 0.0
    %1155 = vmatprep.subr.mxu0 0.0
    %1156 = vmatpush1.xpose.msra.mxu0 0.0
    %1157 = vmatprep.subr.mxu0 0.0
    %1158 = vmatpush1.xpose.msra.mxu0 0.0
    %1159 = vmatprep.subr.mxu0 0.0
    %1160 = vmatpush1.xpose.msra.mxu0 0.0
    %1161 = vmatprep.subr.mxu0 0.0
    %1162 = vmatpush1.xpose.msra.mxu0 0.0
    %1163 = vmatprep.subr.mxu0 0.0
    %1164 = vmatpush1.xpose.msra.mxu0 0.0
    %1165 = vmatprep.subr.mxu0 0.0
    %1166 = vmatpush1.xpose.msra.mxu0 0.0
    %1167 = vmatprep.mubr.f32.mxu0 0.0
    %1168 = vmatmul.mubr.f32.gmra.mrb[0].mxu0 %v1099
    %v1169 = vpop.f32.mrb[0].mxu0
    %v1170 = vadd.f32 0.0, %v1169
    %v1171 = vpop.f32.mrb[0].mxu0
    %1172 = vdwg.mxu0
    %v1173 = vsel %vm335, %v1090, -inf
    %1174 = vmax.xlane.f32.xlu0 %v1173
    %v1175 = vpop.xlane.xlu0 %1174
    %v1176 = vsel %vm335, %v1170, -inf
    %1177 = vmax.xlane.f32.xlu0 %v1176
    %v1178 = vpop.xlane.xlu0 %1177
    %v1179 = vsub.f32 %v1090, %v1175
    %v1180 = vsub.f32 %v1170, %v1178
    %v1181 = vmul.f32 %v1179, 1.442695
    %v1182 = vpow.pop %v1181
    %v1183 = vmul.f32 %v1180, 1.442695
    %v1184 = vpow.pop %v1183
    %v1185 = vsel %vm335, %v1182, 0.0
    %1186 = vadd.xlane.f32.xlu0 %v1185
    %v1187 = vpop.xlane.xlu0 %1186
    %v1188 = vsel %vm335, %v1184, 0.0
    %1189 = vadd.xlane.f32.xlu0 %v1188
    %v1190 = vpop.xlane.xlu0 %1189
    %v1191 = vrcp.pop %v1187
    %v1192 = vrcp.pop %v1190
    %v1193 = vmul.f32 %v1182, %v1191
    %v1194 = vmul.f32 %v1184, %v1192
    %1196 = vrot.lane.b32.xlu0 %v1011, 112
    %v1197 = vpop.permute.xlu0 %1196
    %v1200 = vsel %vm335, %v1193, 0
    %1202 = vmatprep.subr.mxu0 0.0
    %1203 = vmatpush1.msra.mxu0 %v1197
    %1204 = vmatprep.subr.mxu0 0.0
    %1205 = vmatpush1.msra.mxu0 0.0
    %1206 = vmatprep.subr.mxu0 0.0
    %1207 = vmatpush1.msra.mxu0 0.0
    %1208 = vmatprep.subr.mxu0 0.0
    %1209 = vmatpush1.msra.mxu0 0.0
    %1210 = vmatprep.subr.mxu0 0.0
    %1211 = vmatpush1.msra.mxu0 0.0
    %1212 = vmatprep.subr.mxu0 0.0
    %1213 = vmatpush1.msra.mxu0 0.0
    %1214 = vmatprep.subr.mxu0 0.0
    %1215 = vmatpush1.msra.mxu0 0.0
    %1216 = vmatprep.subr.mxu0 0.0
    %1217 = vmatpush1.msra.mxu0 0.0
    %1218 = vmatprep.subr.mxu0 0.0
    %1219 = vmatpush1.msra.mxu0 0.0
    %1220 = vmatprep.subr.mxu0 0.0
    %1221 = vmatpush1.msra.mxu0 0.0
    %1222 = vmatprep.subr.mxu0 0.0
    %1223 = vmatpush1.msra.mxu0 0.0
    %1224 = vmatprep.subr.mxu0 0.0
    %1225 = vmatpush1.msra.mxu0 0.0
    %1226 = vmatprep.subr.mxu0 0.0
    %1227 = vmatpush1.msra.mxu0 0.0
    %1228 = vmatprep.subr.mxu0 0.0
    %1229 = vmatpush1.msra.mxu0 0.0
    %1230 = vmatprep.subr.mxu0 0.0
    %1231 = vmatpush1.msra.mxu0 0.0
    %1232 = vmatprep.subr.mxu0 0.0
    %1233 = vmatpush1.msra.mxu0 0.0
    %1234 = vmatprep.subr.mxu0 0.0
    %1235 = vmatpush1.msra.mxu0 0.0
    %1236 = vmatprep.subr.mxu0 0.0
    %1237 = vmatpush1.msra.mxu0 0.0
    %1238 = vmatprep.subr.mxu0 0.0
    %1239 = vmatpush1.msra.mxu0 0.0
    %1240 = vmatprep.subr.mxu0 0.0
    %1241 = vmatpush1.msra.mxu0 0.0
    %1242 = vmatprep.subr.mxu0 0.0
    %1243 = vmatpush1.msra.mxu0 0.0
    %1244 = vmatprep.subr.mxu0 0.0
    %1245 = vmatpush1.msra.mxu0 0.0
    %1246 = vmatprep.subr.mxu0 0.0
    %1247 = vmatpush1.msra.mxu0 0.0
    %1248 = vmatprep.subr.mxu0 0.0
    %1249 = vmatpush1.msra.mxu0 0.0
    %1250 = vmatprep.subr.mxu0 0.0
    %1251 = vmatpush1.msra.mxu0 0.0
    %1252 = vmatprep.subr.mxu0 0.0
    %1253 = vmatpush1.msra.mxu0 0.0
    %1254 = vmatprep.subr.mxu0 0.0
    %1255 = vmatpush1.msra.mxu0 0.0
    %1256 = vmatprep.subr.mxu0 0.0
    %1257 = vmatpush1.msra.mxu0 0.0
    %1258 = vmatprep.subr.mxu0 0.0
    %1259 = vmatpush1.msra.mxu0 0.0
    %1260 = vmatprep.subr.mxu0 0.0
    %1261 = vmatpush1.msra.mxu0 0.0
    %1262 = vmatprep.subr.mxu0 0.0
    %1263 = vmatpush1.msra.mxu0 0.0
    %1264 = vmatprep.subr.mxu0 0.0
    %1265 = vmatpush1.msra.mxu0 0.0
    %1266 = vmatprep.mubr.f32.mxu0 0.0
    %1267 = vmatmul.mubr.f32.gmra.mrb[0].mxu0 %v1200
    %v1268 = vpop.f32.mrb[0].mxu0
    %v1269 = vadd.f32 0.0, %v1268
    %v1270 = vpop.f32.mrb[0].mxu0
    %1271 = vdwg.mxu0
    %1273 = vrot.lane.b32.xlu0 %v1012, 112
    %v1274 = vpop.permute.xlu0 %1273
    %v1277 = vsel %vm335, %v1194, 0
    %1279 = vmatprep.subr.mxu0 0.0
    %1280 = vmatpush1.msra.mxu0 %v1274
    %1281 = vmatprep.subr.mxu0 0.0
    %1282 = vmatpush1.msra.mxu0 0.0
    %1283 = vmatprep.subr.mxu0 0.0
    %1284 = vmatpush1.msra.mxu0 0.0
    %1285 = vmatprep.subr.mxu0 0.0
    %1286 = vmatpush1.msra.mxu0 0.0
    %1287 = vmatprep.subr.mxu0 0.0
    %1288 = vmatpush1.msra.mxu0 0.0
    %1289 = vmatprep.subr.mxu0 0.0
    %1290 = vmatpush1.msra.mxu0 0.0
    %1291 = vmatprep.subr.mxu0 0.0
    %1292 = vmatpush1.msra.mxu0 0.0
    %1293 = vmatprep.subr.mxu0 0.0
    %1294 = vmatpush1.msra.mxu0 0.0
    %1295 = vmatprep.subr.mxu0 0.0
    %1296 = vmatpush1.msra.mxu0 0.0
    %1297 = vmatprep.subr.mxu0 0.0
    %1298 = vmatpush1.msra.mxu0 0.0
    %1299 = vmatprep.subr.mxu0 0.0
    %1300 = vmatpush1.msra.mxu0 0.0
    %1301 = vmatprep.subr.mxu0 0.0
    %1302 = vmatpush1.msra.mxu0 0.0
    %1303 = vmatprep.subr.mxu0 0.0
    %1304 = vmatpush1.msra.mxu0 0.0
    %1305 = vmatprep.subr.mxu0 0.0
    %1306 = vmatpush1.msra.mxu0 0.0
    %1307 = vmatprep.subr.mxu0 0.0
    %1308 = vmatpush1.msra.mxu0 0.0
    %1309 = vmatprep.subr.mxu0 0.0
    %1310 = vmatpush1.msra.mxu0 0.0
    %1311 = vmatprep.subr.mxu0 0.0
    %1312 = vmatpush1.msra.mxu0 0.0
    %1313 = vmatprep.subr.mxu0 0.0
    %1314 = vmatpush1.msra.mxu0 0.0
    %1315 = vmatprep.subr.mxu0 0.0
    %1316 = vmatpush1.msra.mxu0 0.0
    %1317 = vmatprep.subr.mxu0 0.0
    %1318 = vmatpush1.msra.mxu0 0.0
    %1319 = vmatprep.subr.mxu0 0.0
    %1320 = vmatpush1.msra.mxu0 0.0
    %1321 = vmatprep.subr.mxu0 0.0
    %1322 = vmatpush1.msra.mxu0 0.0
    %1323 = vmatprep.subr.mxu0 0.0
    %1324 = vmatpush1.msra.mxu0 0.0
    %1325 = vmatprep.subr.mxu0 0.0
    %1326 = vmatpush1.msra.mxu0 0.0
    %1327 = vmatprep.subr.mxu0 0.0
    %1328 = vmatpush1.msra.mxu0 0.0
    %1329 = vmatprep.subr.mxu0 0.0
    %1330 = vmatpush1.msra.mxu0 0.0
    %1331 = vmatprep.subr.mxu0 0.0
    %1332 = vmatpush1.msra.mxu0 0.0
    %1333 = vmatprep.subr.mxu0 0.0
    %1334 = vmatpush1.msra.mxu0 0.0
    %1335 = vmatprep.subr.mxu0 0.0
    %1336 = vmatpush1.msra.mxu0 0.0
    %1337 = vmatprep.subr.mxu0 0.0
    %1338 = vmatpush1.msra.mxu0 0.0
    %1339 = vmatprep.subr.mxu0 0.0
    %1340 = vmatpush1.msra.mxu0 0.0
    %1341 = vmatprep.subr.mxu0 0.0
    %1342 = vmatpush1.msra.mxu0 0.0
    %1343 = vmatprep.mubr.f32.mxu0 0.0
    %1344 = vmatmul.mubr.f32.gmra.mrb[0].mxu0 %v1277
    %v1345 = vpop.f32.mrb[0].mxu0
    %v1346 = vadd.f32 0.0, %v1345
    %v1347 = vpop.f32.mrb[0].mxu0
    %1348 = vdwg.mxu0
    %v1349 = vpack.c.bf16 %v1346, %v1269
    %1351 = vrot.lane.b32.xlu0 %v1349, 16
    %v1352 = vpop.permute.xlu0 %1351
    %vm1354 = vcmask 195712
    %1355 = vst.msk [vmem:[#allocation5] sm:$0xff] %vm1354, %v1352
    %v1356 = vld [vmem:[#allocation2] sm:$0xff]
    %v1357 = vld [vmem:[#allocation2 + $0x8] sm:$0xff]
    %v1358 = vld [vmem:[#allocation3] sm:$0xff]
    %v1359 = vld [vmem:[#allocation3 + $0x8] sm:$0xff]
    %v1360 = vld [vmem:[#allocation4] sm:$0xff]
    %v1361 = vld [vmem:[#allocation4 + $0x8] sm:$0xff]
    %1363 = vrot.lane.b32.xlu0 %v1356, 104
    %v1364 = vpop.permute.xlu0 %1363
    %1366 = vrot.lane.b32.xlu0 %v1358, 104
    %v1367 = vpop.permute.xlu0 %1366
    %v1368 = vsel %vm335, %v1364, 0
    %v1370 = vsel %vm335, %v1367, 0
    %1372 = vmatprep.subr.mxu0 0.0
    %1373 = vmatpush1.xpose.msra.mxu0 %v1370
    %1374 = vmatprep.subr.mxu0 0.0
    %1375 = vmatpush1.xpose.msra.mxu0 0.0
    %1376 = vmatprep.subr.mxu0 0.0
    %1377 = vmatpush1.xpose.msra.mxu0 0.0
    %1378 = vmatprep.subr.mxu0 0.0
    %1379 = vmatpush1.xpose.msra.mxu0 0.0
    %1380 = vmatprep.subr.mxu0 0.0
    %1381 = vmatpush1.xpose.msra.mxu0 0.0
    %1382 = vmatprep.subr.mxu0 0.0
    %1383 = vmatpush1.xpose.msra.mxu0 0.0
    %1384 = vmatprep.subr.mxu0 0.0
    %1385 = vmatpush1.xpose.msra.mxu0 0.0
    %1386 = vmatprep.subr.mxu0 0.0
    %1387 = vmatpush1.xpose.msra.mxu0 0.0
    %1388 = vmatprep.subr.mxu0 0.0
    %1389 = vmatpush1.xpose.msra.mxu0 0.0
    %1390 = vmatprep.subr.mxu0 0.0
    %1391 = vmatpush1.xpose.msra.mxu0 0.0
    %1392 = vmatprep.subr.mxu0 0.0
    %1393 = vmatpush1.xpose.msra.mxu0 0.0
    %1394 = vmatprep.subr.mxu0 0.0
    %1395 = vmatpush1.xpose.msra.mxu0 0.0
    %1396 = vmatprep.subr.mxu0 0.0
    %1397 = vmatpush1.xpose.msra.mxu0 0.0
    %1398 = vmatprep.subr.mxu0 0.0
    %1399 = vmatpush1.xpose.msra.mxu0 0.0
    %1400 = vmatprep.subr.mxu0 0.0
    %1401 = vmatpush1.xpose.msra.mxu0 0.0
    %1402 = vmatprep.subr.mxu0 0.0
    %1403 = vmatpush1.xpose.msra.mxu0 0.0
    %1404 = vmatprep.subr.mxu0 0.0
    %1405 = vmatpush1.xpose.msra.mxu0 0.0
    %1406 = vmatprep.subr.mxu0 0.0
    %1407 = vmatpush1.xpose.msra.mxu0 0.0
    %1408 = vmatprep.subr.mxu0 0.0
    %1409 = vmatpush1.xpose.msra.mxu0 0.0
    %1410 = vmatprep.subr.mxu0 0.0
    %1411 = vmatpush1.xpose.msra.mxu0 0.0
    %1412 = vmatprep.subr.mxu0 0.0
    %1413 = vmatpush1.xpose.msra.mxu0 0.0
    %1414 = vmatprep.subr.mxu0 0.0
    %1415 = vmatpush1.xpose.msra.mxu0 0.0
    %1416 = vmatprep.subr.mxu0 0.0
    %1417 = vmatpush1.xpose.msra.mxu0 0.0
    %1418 = vmatprep.subr.mxu0 0.0
    %1419 = vmatpush1.xpose.msra.mxu0 0.0
    %1420 = vmatprep.subr.mxu0 0.0
    %1421 = vmatpush1.xpose.msra.mxu0 0.0
    %1422 = vmatprep.subr.mxu0 0.0
    %1423 = vmatpush1.xpose.msra.mxu0 0.0
    %1424 = vmatprep.subr.mxu0 0.0
    %1425 = vmatpush1.xpose.msra.mxu0 0.0
    %1426 = vmatprep.subr.mxu0 0.0
    %1427 = vmatpush1.xpose.msra.mxu0 0.0
    %1428 = vmatprep.subr.mxu0 0.0
    %1429 = vmatpush1.xpose.msra.mxu0 0.0
    %1430 = vmatprep.subr.mxu0 0.0
    %1431 = vmatpush1.xpose.msra.mxu0 0.0
    %1432 = vmatprep.subr.mxu0 0.0
    %1433 = vmatpush1.xpose.msra.mxu0 0.0
    %1434 = vmatprep.subr.mxu0 0.0
    %1435 = vmatpush1.xpose.msra.mxu0 0.0
    %1436 = vmatprep.mubr.f32.mxu0 0.0
    %1437 = vmatmul.mubr.f32.gmra.mrb[0].mxu0 %v1368
    %v1438 = vpop.f32.mrb[0].mxu0
    %v1439 = vadd.f32 0.0, %v1438
    %v1440 = vpop.f32.mrb[0].mxu0
    %1441 = vdwg.mxu0
    %1443 = vrot.lane.b32.xlu0 %v1357, 104
    %v1444 = vpop.permute.xlu0 %1443
    %1446 = vrot.lane.b32.xlu0 %v1359, 104
    %v1447 = vpop.permute.xlu0 %1446
    %v1448 = vsel %vm335, %v1444, 0
    %v1450 = vsel %vm335, %v1447, 0
    %1452 = vmatprep.subr.mxu0 0.0
    %1453 = vmatpush1.xpose.msra.mxu0 %v1450
    %1454 = vmatprep.subr.mxu0 0.0
    %1455 = vmatpush1.xpose.msra.mxu0 0.0
    %1456 = vmatprep.subr.mxu0 0.0
    %1457 = vmatpush1.xpose.msra.mxu0 0.0
    %1458 = vmatprep.subr.mxu0 0.0
    %1459 = vmatpush1.xpose.msra.mxu0 0.0
    %1460 = vmatprep.subr.mxu0 0.0
    %1461 = vmatpush1.xpose.msra.mxu0 0.0
    %1462 = vmatprep.subr.mxu0 0.0
    %1463 = vmatpush1.xpose.msra.mxu0 0.0
    %1464 = vmatprep.subr.mxu0 0.0
    %1465 = vmatpush1.xpose.msra.mxu0 0.0
    %1466 = vmatprep.subr.mxu0 0.0
    %1467 = vmatpush1.xpose.msra.mxu0 0.0
    %1468 = vmatprep.subr.mxu0 0.0
    %1469 = vmatpush1.xpose.msra.mxu0 0.0
    %1470 = vmatprep.subr.mxu0 0.0
    %1471 = vmatpush1.xpose.msra.mxu0 0.0
    %1472 = vmatprep.subr.mxu0 0.0
    %1473 = vmatpush1.xpose.msra.mxu0 0.0
    %1474 = vmatprep.subr.mxu0 0.0
    %1475 = vmatpush1.xpose.msra.mxu0 0.0
    %1476 = vmatprep.subr.mxu0 0.0
    %1477 = vmatpush1.xpose.msra.mxu0 0.0
    %1478 = vmatprep.subr.mxu0 0.0
    %1479 = vmatpush1.xpose.msra.mxu0 0.0
    %1480 = vmatprep.subr.mxu0 0.0
    %1481 = vmatpush1.xpose.msra.mxu0 0.0
    %1482 = vmatprep.subr.mxu0 0.0
    %1483 = vmatpush1.xpose.msra.mxu0 0.0
    %1484 = vmatprep.subr.mxu0 0.0
    %1485 = vmatpush1.xpose.msra.mxu0 0.0
    %1486 = vmatprep.subr.mxu0 0.0
    %1487 = vmatpush1.xpose.msra.mxu0 0.0
    %1488 = vmatprep.subr.mxu0 0.0
    %1489 = vmatpush1.xpose.msra.mxu0 0.0
    %1490 = vmatprep.subr.mxu0 0.0
    %1491 = vmatpush1.xpose.msra.mxu0 0.0
    %1492 = vmatprep.subr.mxu0 0.0
    %1493 = vmatpush1.xpose.msra.mxu0 0.0
    %1494 = vmatprep.subr.mxu0 0.0
    %1495 = vmatpush1.xpose.msra.mxu0 0.0
    %1496 = vmatprep.subr.mxu0 0.0
    %1497 = vmatpush1.xpose.msra.mxu0 0.0
    %1498 = vmatprep.subr.mxu0 0.0
    %1499 = vmatpush1.xpose.msra.mxu0 0.0
    %1500 = vmatprep.subr.mxu0 0.0
    %1501 = vmatpush1.xpose.msra.mxu0 0.0
    %1502 = vmatprep.subr.mxu0 0.0
    %1503 = vmatpush1.xpose.msra.mxu0 0.0
    %1504 = vmatprep.subr.mxu0 0.0
    %1505 = vmatpush1.xpose.msra.mxu0 0.0
    %1506 = vmatprep.subr.mxu0 0.0
    %1507 = vmatpush1.xpose.msra.mxu0 0.0
    %1508 = vmatprep.subr.mxu0 0.0
    %1509 = vmatpush1.xpose.msra.mxu0 0.0
    %1510 = vmatprep.subr.mxu0 0.0
    %1511 = vmatpush1.xpose.msra.mxu0 0.0
    %1512 = vmatprep.subr.mxu0 0.0
    %1513 = vmatpush1.xpose.msra.mxu0 0.0
    %1514 = vmatprep.subr.mxu0 0.0
    %1515 = vmatpush1.xpose.msra.mxu0 0.0
    %1516 = vmatprep.mubr.f32.mxu0 0.0
    %1517 = vmatmul.mubr.f32.gmra.mrb[0].mxu0 %v1448
    %v1518 = vpop.f32.mrb[0].mxu0
    %v1519 = vadd.f32 0.0, %v1518
    %v1520 = vpop.f32.mrb[0].mxu0
    %1521 = vdwg.mxu0
    %v1522 = vsel %vm335, %v1439, -inf
    %1523 = vmax.xlane.f32.xlu0 %v1522
    %v1524 = vpop.xlane.xlu0 %1523
    %v1525 = vsel %vm335, %v1519, -inf
    %1526 = vmax.xlane.f32.xlu0 %v1525
    %v1527 = vpop.xlane.xlu0 %1526
    %v1528 = vsub.f32 %v1439, %v1524
    %v1529 = vsub.f32 %v1519, %v1527
    %v1530 = vmul.f32 %v1528, 1.442695
    %v1531 = vpow.pop %v1530
    %v1532 = vmul.f32 %v1529, 1.442695
    %v1533 = vpow.pop %v1532
    %v1534 = vsel %vm335, %v1531, 0.0
    %1535 = vadd.xlane.f32.xlu0 %v1534
    %v1536 = vpop.xlane.xlu0 %1535
    %v1537 = vsel %vm335, %v1533, 0.0
    %1538 = vadd.xlane.f32.xlu0 %v1537
    %v1539 = vpop.xlane.xlu0 %1538
    %v1540 = vrcp.pop %v1536
    %v1541 = vrcp.pop %v1539
    %v1542 = vmul.f32 %v1531, %v1540
    %v1543 = vmul.f32 %v1533, %v1541
    %1545 = vrot.lane.b32.xlu0 %v1360, 104
    %v1546 = vpop.permute.xlu0 %1545
    %v1549 = vsel %vm335, %v1542, 0
    %1551 = vmatprep.subr.mxu0 0.0
    %1552 = vmatpush1.msra.mxu0 %v1546
    %1553 = vmatprep.subr.mxu0 0.0
    %1554 = vmatpush1.msra.mxu0 0.0
    %1555 = vmatprep.subr.mxu0 0.0
    %1556 = vmatpush1.msra.mxu0 0.0
    %1557 = vmatprep.subr.mxu0 0.0
    %1558 = vmatpush1.msra.mxu0 0.0
    %1559 = vmatprep.subr.mxu0 0.0
    %1560 = vmatpush1.msra.mxu0 0.0
    %1561 = vmatprep.subr.mxu0 0.0
    %1562 = vmatpush1.msra.mxu0 0.0
    %1563 = vmatprep.subr.mxu0 0.0
    %1564 = vmatpush1.msra.mxu0 0.0
    %1565 = vmatprep.subr.mxu0 0.0
    %1566 = vmatpush1.msra.mxu0 0.0
    %1567 = vmatprep.subr.mxu0 0.0
    %1568 = vmatpush1.msra.mxu0 0.0
    %1569 = vmatprep.subr.mxu0 0.0
    %1570 = vmatpush1.msra.mxu0 0.0
    %1571 = vmatprep.subr.mxu0 0.0
    %1572 = vmatpush1.msra.mxu0 0.0
    %1573 = vmatprep.subr.mxu0 0.0
    %1574 = vmatpush1.msra.mxu0 0.0
    %1575 = vmatprep.subr.mxu0 0.0
    %1576 = vmatpush1.msra.mxu0 0.0
    %1577 = vmatprep.subr.mxu0 0.0
    %1578 = vmatpush1.msra.mxu0 0.0
    %1579 = vmatprep.subr.mxu0 0.0
    %1580 = vmatpush1.msra.mxu0 0.0
    %1581 = vmatprep.subr.mxu0 0.0
    %1582 = vmatpush1.msra.mxu0 0.0
    %1583 = vmatprep.subr.mxu0 0.0
    %1584 = vmatpush1.msra.mxu0 0.0
    %1585 = vmatprep.subr.mxu0 0.0
    %1586 = vmatpush1.msra.mxu0 0.0
    %1587 = vmatprep.subr.mxu0 0.0
    %1588 = vmatpush1.msra.mxu0 0.0
    %1589 = vmatprep.subr.mxu0 0.0
    %1590 = vmatpush1.msra.mxu0 0.0
    %1591 = vmatprep.subr.mxu0 0.0
    %1592 = vmatpush1.msra.mxu0 0.0
    %1593 = vmatprep.subr.mxu0 0.0
    %1594 = vmatpush1.msra.mxu0 0.0
    %1595 = vmatprep.subr.mxu0 0.0
    %1596 = vmatpush1.msra.mxu0 0.0
    %1597 = vmatprep.subr.mxu0 0.0
    %1598 = vmatpush1.msra.mxu0 0.0
    %1599 = vmatprep.subr.mxu0 0.0
    %1600 = vmatpush1.msra.mxu0 0.0
    %1601 = vmatprep.subr.mxu0 0.0
    %1602 = vmatpush1.msra.mxu0 0.0
    %1603 = vmatprep.subr.mxu0 0.0
    %1604 = vmatpush1.msra.mxu0 0.0
    %1605 = vmatprep.subr.mxu0 0.0
    %1606 = vmatpush1.msra.mxu0 0.0
    %1607 = vmatprep.subr.mxu0 0.0
    %1608 = vmatpush1.msra.mxu0 0.0
    %1609 = vmatprep.subr.mxu0 0.0
    %1610 = vmatpush1.msra.mxu0 0.0
    %1611 = vmatprep.subr.mxu0 0.0
    %1612 = vmatpush1.msra.mxu0 0.0
    %1613 = vmatprep.subr.mxu0 0.0
    %1614 = vmatpush1.msra.mxu0 0.0
    %1615 = vmatprep.mubr.f32.mxu0 0.0
    %1616 = vmatmul.mubr.f32.gmra.mrb[0].mxu0 %v1549
    %v1617 = vpop.f32.mrb[0].mxu0
    %v1618 = vadd.f32 0.0, %v1617
    %v1619 = vpop.f32.mrb[0].mxu0
    %1620 = vdwg.mxu0
    %1622 = vrot.lane.b32.xlu0 %v1361, 104
    %v1623 = vpop.permute.xlu0 %1622
    %v1626 = vsel %vm335, %v1543, 0
    %1628 = vmatprep.subr.mxu0 0.0
    %1629 = vmatpush1.msra.mxu0 %v1623
    %1630 = vmatprep.subr.mxu0 0.0
    %1631 = vmatpush1.msra.mxu0 0.0
    %1632 = vmatprep.subr.mxu0 0.0
    %1633 = vmatpush1.msra.mxu0 0.0
    %1634 = vmatprep.subr.mxu0 0.0
    %1635 = vmatpush1.msra.mxu0 0.0
    %1636 = vmatprep.subr.mxu0 0.0
    %1637 = vmatpush1.msra.mxu0 0.0
    %1638 = vmatprep.subr.mxu0 0.0
    %1639 = vmatpush1.msra.mxu0 0.0
    %1640 = vmatprep.subr.mxu0 0.0
    %1641 = vmatpush1.msra.mxu0 0.0
    %1642 = vmatprep.subr.mxu0 0.0
    %1643 = vmatpush1.msra.mxu0 0.0
    %1644 = vmatprep.subr.mxu0 0.0
    %1645 = vmatpush1.msra.mxu0 0.0
    %1646 = vmatprep.subr.mxu0 0.0
    %1647 = vmatpush1.msra.mxu0 0.0
    %1648 = vmatprep.subr.mxu0 0.0
    %1649 = vmatpush1.msra.mxu0 0.0
    %1650 = vmatprep.subr.mxu0 0.0
    %1651 = vmatpush1.msra.mxu0 0.0
    %1652 = vmatprep.subr.mxu0 0.0
    %1653 = vmatpush1.msra.mxu0 0.0
    %1654 = vmatprep.subr.mxu0 0.0
    %1655 = vmatpush1.msra.mxu0 0.0
    %1656 = vmatprep.subr.mxu0 0.0
    %1657 = vmatpush1.msra.mxu0 0.0
    %1658 = vmatprep.subr.mxu0 0.0
    %1659 = vmatpush1.msra.mxu0 0.0
    %1660 = vmatprep.subr.mxu0 0.0
    %1661 = vmatpush1.msra.mxu0 0.0
    %1662 = vmatprep.subr.mxu0 0.0
    %1663 = vmatpush1.msra.mxu0 0.0
    %1664 = vmatprep.subr.mxu0 0.0
    %1665 = vmatpush1.msra.mxu0 0.0
    %1666 = vmatprep.subr.mxu0 0.0
    %1667 = vmatpush1.msra.mxu0 0.0
    %1668 = vmatprep.subr.mxu0 0.0
    %1669 = vmatpush1.msra.mxu0 0.0
    %1670 = vmatprep.subr.mxu0 0.0
    %1671 = vmatpush1.msra.mxu0 0.0
    %1672 = vmatprep.subr.mxu0 0.0
    %1673 = vmatpush1.msra.mxu0 0.0
    %1674 = vmatprep.subr.mxu0 0.0
    %1675 = vmatpush1.msra.mxu0 0.0
    %1676 = vmatprep.subr.mxu0 0.0
    %1677 = vmatpush1.msra.mxu0 0.0
    %1678 = vmatprep.subr.mxu0 0.0
    %1679 = vmatpush1.msra.mxu0 0.0
    %1680 = vmatprep.subr.mxu0 0.0
    %1681 = vmatpush1.msra.mxu0 0.0
    %1682 = vmatprep.subr.mxu0 0.0
    %1683 = vmatpush1.msra.mxu0 0.0
    %1684 = vmatprep.subr.mxu0 0.0
    %1685 = vmatpush1.msra.mxu0 0.0
    %1686 = vmatprep.subr.mxu0 0.0
    %1687 = vmatpush1.msra.mxu0 0.0
    %1688 = vmatprep.subr.mxu0 0.0
    %1689 = vmatpush1.msra.mxu0 0.0
    %1690 = vmatprep.subr.mxu0 0.0
    %1691 = vmatpush1.msra.mxu0 0.0
    %1692 = vmatprep.mubr.f32.mxu0 0.0
    %1693 = vmatmul.mubr.f32.gmra.mrb[0].mxu0 %v1626
    %v1694 = vpop.f32.mrb[0].mxu0
    %v1695 = vadd.f32 0.0, %v1694
    %v1696 = vpop.f32.mrb[0].mxu0
    %1697 = vdwg.mxu0
    %v1698 = vpack.c.bf16 %v1695, %v1618
    %1700 = vrot.lane.b32.xlu0 %v1698, 24
    %v1701 = vpop.permute.xlu0 %1700
    %vm1703 = vcmask 261312
    %1704 = vst.msk [vmem:[#allocation5] sm:$0xff] %vm1703, %v1701
    %v1705 = vld [vmem:[#allocation5] sm:$0xff]
    %v1706 = vld [vmem:[%s5] sm:$0xf]
    %v1707 = vld [vmem:[%s5 + $0x4] sm:$0xf]
    %v1708 = vld [vmem:[%s5 + $0x8] sm:$0xf]
    %v1709 = vld [vmem:[%s5 + $0xc] sm:$0xf]
    %v1710 = vld [vmem:[%s6] sm:$0x1]
    %v1712 = vlaneseq
    %v1713 = vshrl.u32 %v1712, 7
    %v1714 = vsub.s32 0, %v1713
    %v1715 = vrot.slane %v1710, %v1714
    %v1721 = vunpack.c.l.b16 %v1706
    %v1722 = vunpack.c.l.b16 %v1707
    %v1723 = vunpack.c.l.b16 %v1708
    %v1724 = vunpack.c.l.b16 %v1709
    %v1725 = vpack.c.b16 %v1722, %v1721
    %v1726 = vpack.c.b16 %v1724, %v1723
    %v1730 = vsel %vm126, %v1705, 0
    %1732 = vmatprep.subr.bf16.mxu0 0
    %1733 = vmatpush1.bf16.msra.mxu0 %v1725
    %1734 = vmatprep.subr.bf16.mxu0 0
    %1735 = vmatpush1.bf16.msra.mxu0 %v1726
    %1736 = vmatprep.subr.bf16.mxu0 0
    %1737 = vmatpush1.bf16.msra.mxu0 0
    %1738 = vmatprep.subr.bf16.mxu0 0
    %1739 = vmatpush1.bf16.msra.mxu0 0
    %1740 = vmatprep.subr.bf16.mxu0 0
    %1741 = vmatpush1.bf16.msra.mxu0 0
    %1742 = vmatprep.subr.bf16.mxu0 0
    %1743 = vmatpush1.bf16.msra.mxu0 0
    %1744 = vmatprep.subr.bf16.mxu0 0
    %1745 = vmatpush1.bf16.msra.mxu0 0
    %1746 = vmatprep.subr.bf16.mxu0 0
    %1747 = vmatpush1.bf16.msra.mxu0 0
    %1748 = vmatprep.subr.bf16.mxu0 0
    %1749 = vmatpush1.bf16.msra.mxu0 0
    %1750 = vmatprep.subr.bf16.mxu0 0
    %1751 = vmatpush1.bf16.msra.mxu0 0
    %1752 = vmatprep.subr.bf16.mxu0 0
    %1753 = vmatpush1.bf16.msra.mxu0 0
    %1754 = vmatprep.subr.bf16.mxu0 0
    %1755 = vmatpush1.bf16.msra.mxu0 0
    %1756 = vmatprep.subr.bf16.mxu0 0
    %1757 = vmatpush1.bf16.msra.mxu0 0
    %1758 = vmatprep.subr.bf16.mxu0 0
    %1759 = vmatpush1.bf16.msra.mxu0 0
    %1760 = vmatprep.subr.bf16.mxu0 0
    %1761 = vmatpush1.bf16.msra.mxu0 0
    %1762 = vmatprep.subr.bf16.mxu0 0
    %1763 = vmatpush1.bf16.msra.mxu0 0
    %1764 = vmatprep.mubr.bf16.mxu0 0
    %1765 = vmatmul.mubr.bf16.gmra.mrb[0].mxu0 %v1730
    %v1766 = vpop.f32.mrb[0].mxu0
    %v1767 = vadd.f32 %v1715, %v1766
    %v1768 = vpop.f32.mrb[0].mxu0
    %v1769 = vpop.f32.mrb[0].mxu0
    %v1770 = vadd.f32 %v1715, %v1769
    %v1771 = vpop.f32.mrb[0].mxu0
    %1772 = vdwg.mxu0
    %v1773 = vpack.c.bf16 %v1770, %v1767
    %v1775 = vunpack.c.l.b16 %v1773
    %v1776 = vunpack.c.h.b16 %v1773
    %v1777 = vpack.c.b16 %v1775, %v1775
    %v1778 = vpack.c.b16 %v1776, %v1776
    %vm1781 = vcmask 257024
    %1782 = vst.msk [vmem:[#allocation15] sm:$0xf] %vm1781, %v1777
    %1783 = vst.msk [vmem:[#allocation15 + $0x4] sm:$0xf] %vm1781, %v1778
    // Predicated region
    $region50: #{tpu_custom_call.1} parent=1 // pred_check
      _
    $region51: #{tpu_custom_call.1} parent=1 // pred_check_branch
      %1785 = sbr.rel (0) target = $region53
    $region52: #{tpu_custom_call.1} parent=1 // pred_region
      %s1787 = ssub.s32 128, 128
      %1788 = vsyncadd [#allocation8], %s1787
      %s1789 = sshll.u32 [#allocation15], 4
      %s1790 = int_to_ptr.vmem [resolvable:$true] %s1789
      %1795 = dma.vmem_to_hbm [thread:$0]  %s1790, 128, %s7, [#allocation8], 64, 64, 4
    $region53: #{tpu_custom_call.1} parent=1 // pred_fallthru
      _
    // Predicated region
    $region54: #{tpu_custom_call.1} parent=1 // pred_check
      _
    $region55: #{tpu_custom_call.1} parent=1 // pred_check_branch
      %1797 = sbr.rel (0) target = $region57
    $region56: #{tpu_custom_call.1} parent=1 // pred_region
      %1798 = dma.done [#allocation8], 128
    $region57: #{tpu_custom_call.1} parent=1 // pred_fallthru
      _
    %1799 = vsyncpa [#allocation7], 1
    %1800 = vsyncpa [#allocation10], 1
    %1801 = vsyncpa [#allocation13], 1
    %1802 = vsyncpa [#allocation8], 1

</llo_original>
